<compile_context>
chip_gen: v6e
topology: v6e:2x2x1
jax: 0.10.0
libtpu: 0.0.40
codegen_flags: <defaults>
</compile_context>

<pallas_src>
import functools

import jax
import jax.numpy as jnp
from jax.experimental import pallas as pl
from jax.experimental.pallas import tpu as pltpu

# ----------------------------- model sizes ---------------------------------
VOCAB_SRC = 40
VOCAB_TGT = 40
EMBED = 16
HIDDEN = 32
BATCH = 2
SEQ = 8
BATCH_PAD = 8          # sublane width: each timestep becomes one aligned (8,·) tile


# ----------------------------- Pallas kernel --------------------------------
def _gru_step(gi, gh, h, H):
    """PyTorch-convention GRU cell from gate pre-activations (merged r/z sigmoid)."""
    rz = jax.nn.sigmoid(gi[:, :2 * H] + gh[:, :2 * H])   # one EUP op for r and z
    r = rz[:, :H]
    z = rz[:, H:]
    n = jnp.tanh(gi[:, 2 * H:] + r * gh[:, 2 * H:])
    return n + z * (h - n)                               # == (1-z)*n + z*h


def seq2seq_kernel(enc_ids_ref, dec_ids_ref, emb_ref, gates_ref, dense_ref,
                   out_ref, state_ref, *, S, B, BP, H, E, V, VS):
    """Fused encoder+decoder GRU. Everything VMEM/SMEM-resident, no grid."""
    f32, bf16 = jnp.float32, jnp.bfloat16

    # ---- unpack packed weight slab (static ref slices, all 8-row aligned) ----
    o = 0
    enc_wih = gates_ref[o:o + E, :]; o += E          # (E, 3H)
    enc_whh = gates_ref[o:o + H, :]; o += H          # (H, 3H)
    dec_wix = gates_ref[o:o + E, :]; o += E
    dec_wic = gates_ref[o:o + H, :]; o += H
    dec_whh = gates_ref[o:o + H, :]; o += H
    enc_bih = gates_ref[o:o + 1, :]; o += 1          # (1, 3H)
    enc_bhh = gates_ref[o:o + 1, :]; o += 1
    dec_bih = gates_ref[o:o + 1, :]; o += 1
    dec_bhh = gates_ref[o:o + 1, :]; o += 1
    wd = dense_ref[0:H, :]                           # (H, V)
    bd = dense_ref[H:H + 1, :]                       # (1, V)

    # ---- in-kernel embedding gather (token ids are SMEM scalars) ----
    pad_rows = jnp.zeros((BP - B, E), f32) if BP > B else None

    def gather_time_major(ids_ref, row_base):
        blocks = []
        for t in range(S):
            rows = [emb_ref[pl.ds(row_base + ids_ref[b, t], 1), :] for b in range(B)]
            if pad_rows is not None:
                rows.append(pad_rows)                # padded lanes: discarded later
            blocks.append(jnp.concatenate(rows, axis=0))       # (BP, E)
        return jnp.concatenate(blocks, axis=0)                 # (S*BP, E), row = t*BP+b

    x_enc = gather_time_major(enc_ids_ref, 0)
    x_dec = gather_time_major(dec_ids_ref, VS)

    # ---- encoder: input-gate projection hoisted out of the recurrence ----
    gi_enc = jnp.dot(x_enc.astype(bf16), enc_wih.astype(bf16),
                     preferred_element_type=f32) + enc_bih              # (S*BP, 3H)
    enc_whh_b = enc_whh.astype(bf16)

    h = jnp.zeros((BP, H), f32)
    for t in range(S):                                # static trip count -> unrolled
        gi = gi_enc[t * BP:(t + 1) * BP, :]           # aligned (8, 3H) tile
        gh = jnp.dot(h.astype(bf16), enc_whh_b, preferred_element_type=f32) + enc_bhh
        h = _gru_step(gi, gh, h, H)
    enc_state = h                                                        # (BP, H)

    # ---- decoder: cat((x, ctx)) @ W_ih == x @ W_ix + ctx @ W_ic, both hoisted ----
    gi_dec = jnp.dot(x_dec.astype(bf16), dec_wix.astype(bf16),
                     preferred_element_type=f32) + dec_bih               # (S*BP, 3H)
    gi_ctx = jnp.dot(enc_state.astype(bf16), dec_wic.astype(bf16),
                     preferred_element_type=f32)                         # (BP, 3H)
    dec_whh_b = dec_whh.astype(bf16)

    h = enc_state                      # decoder.init_state == encoder final hidden
    hs = []                            # hidden states stay in registers
    for t in range(S):
        gi = gi_dec[t * BP:(t + 1) * BP, :] + gi_ctx
        gh = jnp.dot(h.astype(bf16), dec_whh_b, preferred_element_type=f32) + dec_bhh
        h = _gru_step(gi, gh, h, H)
        hs.append(h)

    # ---- output Dense over all timesteps at once, emitted batch-major ----
    hs_tm = jnp.concatenate(hs, axis=0)                                  # (S*BP, H)
    out_tm = jnp.dot(hs_tm.astype(bf16), wd.astype(bf16),
                     preferred_element_type=f32) + bd                    # (S*BP, V)
    out3 = out_tm.reshape(S, BP, V)
    for b in range(B):                 # B=2 static: out_ref is already (B, S, V)
        out_ref[b, :, :] = out3[:, b, :]
    state_ref[...] = h[0:B, :]                                           # (B, H)


# ----------------------------- wrapper ---------------------------------------
def encoder_decoder_forward(packed, enc_tokens, dec_tokens):
    """Mirrors EncoderDecoder.forward(enc_X, dec_X); tokens are (B, S) int32."""
    B, S = enc_tokens.shape
    V = packed["dense"].shape[1]
    assert BATCH_PAD >= B
    kern = functools.partial(seq2seq_kernel, S=S, B=B, BP=BATCH_PAD,
                             H=HIDDEN, E=EMBED, V=V, VS=VOCAB_SRC)
    out, state = pl.pallas_call(
        kern,
        out_shape=(jax.ShapeDtypeStruct((B, S, V), jnp.float32),
                   jax.ShapeDtypeStruct((B, HIDDEN), jnp.float32)),
        in_specs=[
            pl.BlockSpec(memory_space=pltpu.MemorySpace.SMEM),   # enc token ids
            pl.BlockSpec(memory_space=pltpu.MemorySpace.SMEM),   # dec token ids
            pl.BlockSpec(memory_space=pltpu.MemorySpace.VMEM),   # embedding slab
            pl.BlockSpec(memory_space=pltpu.MemorySpace.VMEM),   # GRU weight/bias slab
            pl.BlockSpec(memory_space=pltpu.MemorySpace.VMEM),   # dense W|b slab
        ],
    )(enc_tokens, dec_tokens, packed["emb"], packed["gates"], packed["dense"])
    return out, state


# ----------------------------- pure-JAX reference ---------------------------
def _gru_scan(x_seq, h0, gi_fn, whh, bhh, H):
    def step(h, x):
        gi = gi_fn(x)
        gh = h @ whh + bhh
        r = jax.nn.sigmoid(gi[:, :H] + gh[:, :H])
        z = jax.nn.sigmoid(gi[:, H:2 * H] + gh[:, H:2 * H])
        n = jnp.tanh(gi[:, 2 * H:] + r * gh[:, 2 * H:])
        h_new = (1.0 - z) * n + z * h
        return h_new, h_new
    hT, outs = jax.lax.scan(step, h0, x_seq)
    return outs, hT


def reference_forward(params, enc_tokens, dec_tokens):
    H = HIDDEN
    B = enc_tokens.shape[0]
    enc_emb = jnp.transpose(params["enc_emb"][enc_tokens], (1, 0, 2))
    gi_fn = lambda x: x @ params["enc_wih"] + params["enc_bih"]
    _, enc_state = _gru_scan(enc_emb, jnp.zeros((B, H), jnp.float32),
                             gi_fn, params["enc_whh"], params["enc_bhh"], H)
    dec_emb = jnp.transpose(params["dec_emb"][dec_tokens], (1, 0, 2))
    gi_fn_d = lambda x: (x @ params["dec_wix"] + enc_state @ params["dec_wic"]
                         + params["dec_bih"])
    outs, dec_state = _gru_scan(dec_emb, enc_state, gi_fn_d,
                                params["dec_whh"], params["dec_bhh"], H)
    dec_out = outs @ params["dec_wd"] + params["dec_bd"]
    return jnp.transpose(dec_out, (1, 0, 2)), dec_state


# ----------------------------- param init / packing -------------------------
def init_params(key):
    ks = jax.random.split(key, 12)
    s = 0.1
    H, E = HIDDEN, EMBED
    return {
        "enc_emb": s * jax.random.normal(ks[0], (VOCAB_SRC, E), jnp.float32),
        "enc_wih": s * jax.random.normal(ks[1], (E, 3 * H), jnp.float32),
        "enc_whh": s * jax.random.normal(ks[2], (H, 3 * H), jnp.float32),
        "enc_bih": s * jax.random.normal(ks[3], (1, 3 * H), jnp.float32),
        "enc_bhh": s * jax.random.normal(ks[4], (1, 3 * H), jnp.float32),
        "dec_emb": s * jax.random.normal(ks[5], (VOCAB_TGT, E), jnp.float32),
        "dec_wix": s * jax.random.normal(ks[6], (E, 3 * H), jnp.float32),
        "dec_wic": s * jax.random.normal(ks[7], (H, 3 * H), jnp.float32),
        "dec_whh": s * jax.random.normal(ks[8], (H, 3 * H), jnp.float32),
        "dec_bih": s * jax.random.normal(ks[9], (1, 3 * H), jnp.float32),
        "dec_bhh": s * jax.random.normal(ks[10], (1, 3 * H), jnp.float32),
        "dec_wd": s * jax.random.normal(ks[11], (H, VOCAB_TGT), jnp.float32),
        "dec_bd": jnp.zeros((1, VOCAB_TGT), jnp.float32),
    }


def pack_params(p):
    """Pack the 13 parameters into 3 DMA slabs (done once, outside the jit)."""
    emb = jnp.concatenate([p["enc_emb"], p["dec_emb"]], axis=0)            # (80, E)
    gates = jnp.concatenate([p["enc_wih"], p["enc_whh"], p["dec_wix"],
                             p["dec_wic"], p["dec_whh"],
                             p["enc_bih"], p["enc_bhh"],
                             p["dec_bih"], p["dec_bhh"]], axis=0)          # (132, 3H)
    dense = jnp.concatenate([p["dec_wd"], p["dec_bd"]], axis=0)            # (H+1, V)
    return {"emb": emb, "gates": gates, "dense": dense}


if __name__ == "__main__":
    key = jax.random.PRNGKey(0)
    kp, ke, kd = jax.random.split(key, 3)
    params = init_params(kp)
    packed = pack_params(params)
    enc_tokens = jax.random.randint(ke, (BATCH, SEQ), 0, VOCAB_SRC, dtype=jnp.int32)
    dec_tokens = jax.random.randint(kd, (BATCH, SEQ), 0, VOCAB_TGT, dtype=jnp.int32)

    dec_out, dec_state = jax.jit(encoder_decoder_forward)(
        packed, enc_tokens, dec_tokens)
    jax.block_until_ready((dec_out, dec_state))

    ref_out, ref_state = jax.jit(reference_forward)(params, enc_tokens, dec_tokens)
    jax.block_until_ready((ref_out, ref_state))

    assert dec_out.shape == (BATCH, SEQ, VOCAB_TGT)
    assert dec_state.shape == (BATCH, HIDDEN)
    assert jnp.allclose(dec_out, ref_out, atol=2e-2, rtol=2e-2)
    assert jnp.allclose(dec_state, ref_state, atol=2e-2, rtol=2e-2)
    print("KERNEL_OK")
</pallas_src>

<mosaic_0001>
module attributes {stable_mosaic.version = 11 : i64} {
  func.func @seq2seq_kernel(%arg0: memref<2x8xi32, #tpu.memory_space<smem>>, %arg1: memref<2x8xi32, #tpu.memory_space<smem>>, %arg2: memref<80x16xf32, #tpu.memory_space<vmem>>, %arg3: memref<132x96xf32, #tpu.memory_space<vmem>>, %arg4: memref<33x40xf32, #tpu.memory_space<vmem>>, %arg5: memref<2x8x40xf32, #tpu.memory_space<vmem>>, %arg6: memref<2x32xf32, #tpu.memory_space<vmem>>) attributes {dimension_semantics = [], scalar_prefetch = 0 : i64, scratch_operands = 0 : i64, tpu.core_type = #tpu.core_type<tc>} {
    %c0 = arith.constant 0 : index
    %c0_0 = arith.constant 0 : index
    %0 = vector.load %arg3[%c0, %c0_0] : memref<132x96xf32, #tpu.memory_space<vmem>>, vector<16x96xf32>
    %c16 = arith.constant 16 : index
    %c0_1 = arith.constant 0 : index
    %1 = vector.load %arg3[%c16, %c0_1] : memref<132x96xf32, #tpu.memory_space<vmem>>, vector<32x96xf32>
    %c48 = arith.constant 48 : index
    %c0_2 = arith.constant 0 : index
    %2 = vector.load %arg3[%c48, %c0_2] : memref<132x96xf32, #tpu.memory_space<vmem>>, vector<16x96xf32>
    %c64 = arith.constant 64 : index
    %c0_3 = arith.constant 0 : index
    %3 = vector.load %arg3[%c64, %c0_3] : memref<132x96xf32, #tpu.memory_space<vmem>>, vector<32x96xf32>
    %c96 = arith.constant 96 : index
    %c0_4 = arith.constant 0 : index
    %4 = vector.load %arg3[%c96, %c0_4] : memref<132x96xf32, #tpu.memory_space<vmem>>, vector<32x96xf32>
    %c128 = arith.constant 128 : index
    %c0_5 = arith.constant 0 : index
    %5 = vector.load %arg3[%c128, %c0_5] : memref<132x96xf32, #tpu.memory_space<vmem>>, vector<1x96xf32>
    %c129 = arith.constant 129 : index
    %c0_6 = arith.constant 0 : index
    %6 = vector.load %arg3[%c129, %c0_6] : memref<132x96xf32, #tpu.memory_space<vmem>>, vector<1x96xf32>
    %c130 = arith.constant 130 : index
    %c0_7 = arith.constant 0 : index
    %7 = vector.load %arg3[%c130, %c0_7] : memref<132x96xf32, #tpu.memory_space<vmem>>, vector<1x96xf32>
    %c131 = arith.constant 131 : index
    %c0_8 = arith.constant 0 : index
    %8 = vector.load %arg3[%c131, %c0_8] : memref<132x96xf32, #tpu.memory_space<vmem>>, vector<1x96xf32>
    %c0_9 = arith.constant 0 : index
    %c0_10 = arith.constant 0 : index
    %9 = vector.load %arg4[%c0_9, %c0_10] : memref<33x40xf32, #tpu.memory_space<vmem>>, vector<32x40xf32>
    %c32 = arith.constant 32 : index
    %c0_11 = arith.constant 0 : index
    %10 = vector.load %arg4[%c32, %c0_11] : memref<33x40xf32, #tpu.memory_space<vmem>>, vector<1x40xf32>
    %cst = arith.constant 0.000000e+00 : f32
    %11 = vector.broadcast %cst : f32 to vector<6x16xf32>
    %c0_12 = arith.constant 0 : index
    %c0_13 = arith.constant 0 : index
    %12 = memref.load %arg0[%c0_12, %c0_13] : memref<2x8xi32, #tpu.memory_space<smem>>
    %c0_i32 = arith.constant 0 : i32
    %13 = arith.addi %c0_i32, %12 : i32
    %14 = arith.index_cast %13 : i32 to index
    %c0_14 = arith.constant 0 : index
    %15 = vector.load %arg2[%14, %c0_14] : memref<80x16xf32, #tpu.memory_space<vmem>>, vector<1x16xf32>
    %c1 = arith.constant 1 : index
    %c0_15 = arith.constant 0 : index
    %16 = memref.load %arg0[%c1, %c0_15] : memref<2x8xi32, #tpu.memory_space<smem>>
    %c0_i32_16 = arith.constant 0 : i32
    %17 = arith.addi %c0_i32_16, %16 : i32
    %18 = arith.index_cast %17 : i32 to index
    %c0_17 = arith.constant 0 : index
    %19 = vector.load %arg2[%18, %c0_17] : memref<80x16xf32, #tpu.memory_space<vmem>>, vector<1x16xf32>
    %20 = tpu.concatenate %15, %19, %11 in 0 : vector<1x16xf32>, vector<1x16xf32>, vector<6x16xf32> -> vector<8x16xf32>
    %c0_18 = arith.constant 0 : index
    %c1_19 = arith.constant 1 : index
    %21 = memref.load %arg0[%c0_18, %c1_19] : memref<2x8xi32, #tpu.memory_space<smem>>
    %c0_i32_20 = arith.constant 0 : i32
    %22 = arith.addi %c0_i32_20, %21 : i32
    %23 = arith.index_cast %22 : i32 to index
    %c0_21 = arith.constant 0 : index
    %24 = vector.load %arg2[%23, %c0_21] : memref<80x16xf32, #tpu.memory_space<vmem>>, vector<1x16xf32>
    %c1_22 = arith.constant 1 : index
    %c1_23 = arith.constant 1 : index
    %25 = memref.load %arg0[%c1_22, %c1_23] : memref<2x8xi32, #tpu.memory_space<smem>>
    %c0_i32_24 = arith.constant 0 : i32
    %26 = arith.addi %c0_i32_24, %25 : i32
    %27 = arith.index_cast %26 : i32 to index
    %c0_25 = arith.constant 0 : index
    %28 = vector.load %arg2[%27, %c0_25] : memref<80x16xf32, #tpu.memory_space<vmem>>, vector<1x16xf32>
    %29 = tpu.concatenate %24, %28, %11 in 0 : vector<1x16xf32>, vector<1x16xf32>, vector<6x16xf32> -> vector<8x16xf32>
    %c0_26 = arith.constant 0 : index
    %c2 = arith.constant 2 : index
    %30 = memref.load %arg0[%c0_26, %c2] : memref<2x8xi32, #tpu.memory_space<smem>>
    %c0_i32_27 = arith.constant 0 : i32
    %31 = arith.addi %c0_i32_27, %30 : i32
    %32 = arith.index_cast %31 : i32 to index
    %c0_28 = arith.constant 0 : index
    %33 = vector.load %arg2[%32, %c0_28] : memref<80x16xf32, #tpu.memory_space<vmem>>, vector<1x16xf32>
    %c1_29 = arith.constant 1 : index
    %c2_30 = arith.constant 2 : index
    %34 = memref.load %arg0[%c1_29, %c2_30] : memref<2x8xi32, #tpu.memory_space<smem>>
    %c0_i32_31 = arith.constant 0 : i32
    %35 = arith.addi %c0_i32_31, %34 : i32
    %36 = arith.index_cast %35 : i32 to index
    %c0_32 = arith.constant 0 : index
    %37 = vector.load %arg2[%36, %c0_32] : memref<80x16xf32, #tpu.memory_space<vmem>>, vector<1x16xf32>
    %38 = tpu.concatenate %33, %37, %11 in 0 : vector<1x16xf32>, vector<1x16xf32>, vector<6x16xf32> -> vector<8x16xf32>
    %c0_33 = arith.constant 0 : index
    %c3 = arith.constant 3 : index
    %39 = memref.load %arg0[%c0_33, %c3] : memref<2x8xi32, #tpu.memory_space<smem>>
    %c0_i32_34 = arith.constant 0 : i32
    %40 = arith.addi %c0_i32_34, %39 : i32
    %41 = arith.index_cast %40 : i32 to index
    %c0_35 = arith.constant 0 : index
    %42 = vector.load %arg2[%41, %c0_35] : memref<80x16xf32, #tpu.memory_space<vmem>>, vector<1x16xf32>
    %c1_36 = arith.constant 1 : index
    %c3_37 = arith.constant 3 : index
    %43 = memref.load %arg0[%c1_36, %c3_37] : memref<2x8xi32, #tpu.memory_space<smem>>
    %c0_i32_38 = arith.constant 0 : i32
    %44 = arith.addi %c0_i32_38, %43 : i32
    %45 = arith.index_cast %44 : i32 to index
    %c0_39 = arith.constant 0 : index
    %46 = vector.load %arg2[%45, %c0_39] : memref<80x16xf32, #tpu.memory_space<vmem>>, vector<1x16xf32>
    %47 = tpu.concatenate %42, %46, %11 in 0 : vector<1x16xf32>, vector<1x16xf32>, vector<6x16xf32> -> vector<8x16xf32>
    %c0_40 = arith.constant 0 : index
    %c4 = arith.constant 4 : index
    %48 = memref.load %arg0[%c0_40, %c4] : memref<2x8xi32, #tpu.memory_space<smem>>
    %c0_i32_41 = arith.constant 0 : i32
    %49 = arith.addi %c0_i32_41, %48 : i32
    %50 = arith.index_cast %49 : i32 to index
    %c0_42 = arith.constant 0 : index
    %51 = vector.load %arg2[%50, %c0_42] : memref<80x16xf32, #tpu.memory_space<vmem>>, vector<1x16xf32>
    %c1_43 = arith.constant 1 : index
    %c4_44 = arith.constant 4 : index
    %52 = memref.load %arg0[%c1_43, %c4_44] : memref<2x8xi32, #tpu.memory_space<smem>>
    %c0_i32_45 = arith.constant 0 : i32
    %53 = arith.addi %c0_i32_45, %52 : i32
    %54 = arith.index_cast %53 : i32 to index
    %c0_46 = arith.constant 0 : index
    %55 = vector.load %arg2[%54, %c0_46] : memref<80x16xf32, #tpu.memory_space<vmem>>, vector<1x16xf32>
    %56 = tpu.concatenate %51, %55, %11 in 0 : vector<1x16xf32>, vector<1x16xf32>, vector<6x16xf32> -> vector<8x16xf32>
    %c0_47 = arith.constant 0 : index
    %c5 = arith.constant 5 : index
    %57 = memref.load %arg0[%c0_47, %c5] : memref<2x8xi32, #tpu.memory_space<smem>>
    %c0_i32_48 = arith.constant 0 : i32
    %58 = arith.addi %c0_i32_48, %57 : i32
    %59 = arith.index_cast %58 : i32 to index
    %c0_49 = arith.constant 0 : index
    %60 = vector.load %arg2[%59, %c0_49] : memref<80x16xf32, #tpu.memory_space<vmem>>, vector<1x16xf32>
    %c1_50 = arith.constant 1 : index
    %c5_51 = arith.constant 5 : index
    %61 = memref.load %arg0[%c1_50, %c5_51] : memref<2x8xi32, #tpu.memory_space<smem>>
    %c0_i32_52 = arith.constant 0 : i32
    %62 = arith.addi %c0_i32_52, %61 : i32
    %63 = arith.index_cast %62 : i32 to index
    %c0_53 = arith.constant 0 : index
    %64 = vector.load %arg2[%63, %c0_53] : memref<80x16xf32, #tpu.memory_space<vmem>>, vector<1x16xf32>
    %65 = tpu.concatenate %60, %64, %11 in 0 : vector<1x16xf32>, vector<1x16xf32>, vector<6x16xf32> -> vector<8x16xf32>
    %c0_54 = arith.constant 0 : index
    %c6 = arith.constant 6 : index
    %66 = memref.load %arg0[%c0_54, %c6] : memref<2x8xi32, #tpu.memory_space<smem>>
    %c0_i32_55 = arith.constant 0 : i32
    %67 = arith.addi %c0_i32_55, %66 : i32
    %68 = arith.index_cast %67 : i32 to index
    %c0_56 = arith.constant 0 : index
    %69 = vector.load %arg2[%68, %c0_56] : memref<80x16xf32, #tpu.memory_space<vmem>>, vector<1x16xf32>
    %c1_57 = arith.constant 1 : index
    %c6_58 = arith.constant 6 : index
    %70 = memref.load %arg0[%c1_57, %c6_58] : memref<2x8xi32, #tpu.memory_space<smem>>
    %c0_i32_59 = arith.constant 0 : i32
    %71 = arith.addi %c0_i32_59, %70 : i32
    %72 = arith.index_cast %71 : i32 to index
    %c0_60 = arith.constant 0 : index
    %73 = vector.load %arg2[%72, %c0_60] : memref<80x16xf32, #tpu.memory_space<vmem>>, vector<1x16xf32>
    %74 = tpu.concatenate %69, %73, %11 in 0 : vector<1x16xf32>, vector<1x16xf32>, vector<6x16xf32> -> vector<8x16xf32>
    %c0_61 = arith.constant 0 : index
    %c7 = arith.constant 7 : index
    %75 = memref.load %arg0[%c0_61, %c7] : memref<2x8xi32, #tpu.memory_space<smem>>
    %c0_i32_62 = arith.constant 0 : i32
    %76 = arith.addi %c0_i32_62, %75 : i32
    %77 = arith.index_cast %76 : i32 to index
    %c0_63 = arith.constant 0 : index
    %78 = vector.load %arg2[%77, %c0_63] : memref<80x16xf32, #tpu.memory_space<vmem>>, vector<1x16xf32>
    %c1_64 = arith.constant 1 : index
    %c7_65 = arith.constant 7 : index
    %79 = memref.load %arg0[%c1_64, %c7_65] : memref<2x8xi32, #tpu.memory_space<smem>>
    %c0_i32_66 = arith.constant 0 : i32
    %80 = arith.addi %c0_i32_66, %79 : i32
    %81 = arith.index_cast %80 : i32 to index
    %c0_67 = arith.constant 0 : index
    %82 = vector.load %arg2[%81, %c0_67] : memref<80x16xf32, #tpu.memory_space<vmem>>, vector<1x16xf32>
    %83 = tpu.concatenate %78, %82, %11 in 0 : vector<1x16xf32>, vector<1x16xf32>, vector<6x16xf32> -> vector<8x16xf32>
    %84 = tpu.concatenate %20, %29, %38, %47, %56, %65, %74, %83 in 0 : vector<8x16xf32>, vector<8x16xf32>, vector<8x16xf32>, vector<8x16xf32>, vector<8x16xf32>, vector<8x16xf32>, vector<8x16xf32>, vector<8x16xf32> -> vector<64x16xf32>
    %c0_68 = arith.constant 0 : index
    %c0_69 = arith.constant 0 : index
    %85 = memref.load %arg1[%c0_68, %c0_69] : memref<2x8xi32, #tpu.memory_space<smem>>
    %c40_i32 = arith.constant 40 : i32
    %86 = arith.addi %c40_i32, %85 : i32
    %87 = arith.index_cast %86 : i32 to index
    %c0_70 = arith.constant 0 : index
    %88 = vector.load %arg2[%87, %c0_70] : memref<80x16xf32, #tpu.memory_space<vmem>>, vector<1x16xf32>
    %c1_71 = arith.constant 1 : index
    %c0_72 = arith.constant 0 : index
    %89 = memref.load %arg1[%c1_71, %c0_72] : memref<2x8xi32, #tpu.memory_space<smem>>
    %c40_i32_73 = arith.constant 40 : i32
    %90 = arith.addi %c40_i32_73, %89 : i32
    %91 = arith.index_cast %90 : i32 to index
    %c0_74 = arith.constant 0 : index
    %92 = vector.load %arg2[%91, %c0_74] : memref<80x16xf32, #tpu.memory_space<vmem>>, vector<1x16xf32>
    %93 = tpu.concatenate %88, %92, %11 in 0 : vector<1x16xf32>, vector<1x16xf32>, vector<6x16xf32> -> vector<8x16xf32>
    %c0_75 = arith.constant 0 : index
    %c1_76 = arith.constant 1 : index
    %94 = memref.load %arg1[%c0_75, %c1_76] : memref<2x8xi32, #tpu.memory_space<smem>>
    %c40_i32_77 = arith.constant 40 : i32
    %95 = arith.addi %c40_i32_77, %94 : i32
    %96 = arith.index_cast %95 : i32 to index
    %c0_78 = arith.constant 0 : index
    %97 = vector.load %arg2[%96, %c0_78] : memref<80x16xf32, #tpu.memory_space<vmem>>, vector<1x16xf32>
    %c1_79 = arith.constant 1 : index
    %c1_80 = arith.constant 1 : index
    %98 = memref.load %arg1[%c1_79, %c1_80] : memref<2x8xi32, #tpu.memory_space<smem>>
    %c40_i32_81 = arith.constant 40 : i32
    %99 = arith.addi %c40_i32_81, %98 : i32
    %100 = arith.index_cast %99 : i32 to index
    %c0_82 = arith.constant 0 : index
    %101 = vector.load %arg2[%100, %c0_82] : memref<80x16xf32, #tpu.memory_space<vmem>>, vector<1x16xf32>
    %102 = tpu.concatenate %97, %101, %11 in 0 : vector<1x16xf32>, vector<1x16xf32>, vector<6x16xf32> -> vector<8x16xf32>
    %c0_83 = arith.constant 0 : index
    %c2_84 = arith.constant 2 : index
    %103 = memref.load %arg1[%c0_83, %c2_84] : memref<2x8xi32, #tpu.memory_space<smem>>
    %c40_i32_85 = arith.constant 40 : i32
    %104 = arith.addi %c40_i32_85, %103 : i32
    %105 = arith.index_cast %104 : i32 to index
    %c0_86 = arith.constant 0 : index
    %106 = vector.load %arg2[%105, %c0_86] : memref<80x16xf32, #tpu.memory_space<vmem>>, vector<1x16xf32>
    %c1_87 = arith.constant 1 : index
    %c2_88 = arith.constant 2 : index
    %107 = memref.load %arg1[%c1_87, %c2_88] : memref<2x8xi32, #tpu.memory_space<smem>>
    %c40_i32_89 = arith.constant 40 : i32
    %108 = arith.addi %c40_i32_89, %107 : i32
    %109 = arith.index_cast %108 : i32 to index
    %c0_90 = arith.constant 0 : index
    %110 = vector.load %arg2[%109, %c0_90] : memref<80x16xf32, #tpu.memory_space<vmem>>, vector<1x16xf32>
    %111 = tpu.concatenate %106, %110, %11 in 0 : vector<1x16xf32>, vector<1x16xf32>, vector<6x16xf32> -> vector<8x16xf32>
    %c0_91 = arith.constant 0 : index
    %c3_92 = arith.constant 3 : index
    %112 = memref.load %arg1[%c0_91, %c3_92] : memref<2x8xi32, #tpu.memory_space<smem>>
    %c40_i32_93 = arith.constant 40 : i32
    %113 = arith.addi %c40_i32_93, %112 : i32
    %114 = arith.index_cast %113 : i32 to index
    %c0_94 = arith.constant 0 : index
    %115 = vector.load %arg2[%114, %c0_94] : memref<80x16xf32, #tpu.memory_space<vmem>>, vector<1x16xf32>
    %c1_95 = arith.constant 1 : index
    %c3_96 = arith.constant 3 : index
    %116 = memref.load %arg1[%c1_95, %c3_96] : memref<2x8xi32, #tpu.memory_space<smem>>
    %c40_i32_97 = arith.constant 40 : i32
    %117 = arith.addi %c40_i32_97, %116 : i32
    %118 = arith.index_cast %117 : i32 to index
    %c0_98 = arith.constant 0 : index
    %119 = vector.load %arg2[%118, %c0_98] : memref<80x16xf32, #tpu.memory_space<vmem>>, vector<1x16xf32>
    %120 = tpu.concatenate %115, %119, %11 in 0 : vector<1x16xf32>, vector<1x16xf32>, vector<6x16xf32> -> vector<8x16xf32>
    %c0_99 = arith.constant 0 : index
    %c4_100 = arith.constant 4 : index
    %121 = memref.load %arg1[%c0_99, %c4_100] : memref<2x8xi32, #tpu.memory_space<smem>>
    %c40_i32_101 = arith.constant 40 : i32
    %122 = arith.addi %c40_i32_101, %121 : i32
    %123 = arith.index_cast %122 : i32 to index
    %c0_102 = arith.constant 0 : index
    %124 = vector.load %arg2[%123, %c0_102] : memref<80x16xf32, #tpu.memory_space<vmem>>, vector<1x16xf32>
    %c1_103 = arith.constant 1 : index
    %c4_104 = arith.constant 4 : index
    %125 = memref.load %arg1[%c1_103, %c4_104] : memref<2x8xi32, #tpu.memory_space<smem>>
    %c40_i32_105 = arith.constant 40 : i32
    %126 = arith.addi %c40_i32_105, %125 : i32
    %127 = arith.index_cast %126 : i32 to index
    %c0_106 = arith.constant 0 : index
    %128 = vector.load %arg2[%127, %c0_106] : memref<80x16xf32, #tpu.memory_space<vmem>>, vector<1x16xf32>
    %129 = tpu.concatenate %124, %128, %11 in 0 : vector<1x16xf32>, vector<1x16xf32>, vector<6x16xf32> -> vector<8x16xf32>
    %c0_107 = arith.constant 0 : index
    %c5_108 = arith.constant 5 : index
    %130 = memref.load %arg1[%c0_107, %c5_108] : memref<2x8xi32, #tpu.memory_space<smem>>
    %c40_i32_109 = arith.constant 40 : i32
    %131 = arith.addi %c40_i32_109, %130 : i32
    %132 = arith.index_cast %131 : i32 to index
    %c0_110 = arith.constant 0 : index
    %133 = vector.load %arg2[%132, %c0_110] : memref<80x16xf32, #tpu.memory_space<vmem>>, vector<1x16xf32>
    %c1_111 = arith.constant 1 : index
    %c5_112 = arith.constant 5 : index
    %134 = memref.load %arg1[%c1_111, %c5_112] : memref<2x8xi32, #tpu.memory_space<smem>>
    %c40_i32_113 = arith.constant 40 : i32
    %135 = arith.addi %c40_i32_113, %134 : i32
    %136 = arith.index_cast %135 : i32 to index
    %c0_114 = arith.constant 0 : index
    %137 = vector.load %arg2[%136, %c0_114] : memref<80x16xf32, #tpu.memory_space<vmem>>, vector<1x16xf32>
    %138 = tpu.concatenate %133, %137, %11 in 0 : vector<1x16xf32>, vector<1x16xf32>, vector<6x16xf32> -> vector<8x16xf32>
    %c0_115 = arith.constant 0 : index
    %c6_116 = arith.constant 6 : index
    %139 = memref.load %arg1[%c0_115, %c6_116] : memref<2x8xi32, #tpu.memory_space<smem>>
    %c40_i32_117 = arith.constant 40 : i32
    %140 = arith.addi %c40_i32_117, %139 : i32
    %141 = arith.index_cast %140 : i32 to index
    %c0_118 = arith.constant 0 : index
    %142 = vector.load %arg2[%141, %c0_118] : memref<80x16xf32, #tpu.memory_space<vmem>>, vector<1x16xf32>
    %c1_119 = arith.constant 1 : index
    %c6_120 = arith.constant 6 : index
    %143 = memref.load %arg1[%c1_119, %c6_120] : memref<2x8xi32, #tpu.memory_space<smem>>
    %c40_i32_121 = arith.constant 40 : i32
    %144 = arith.addi %c40_i32_121, %143 : i32
    %145 = arith.index_cast %144 : i32 to index
    %c0_122 = arith.constant 0 : index
    %146 = vector.load %arg2[%145, %c0_122] : memref<80x16xf32, #tpu.memory_space<vmem>>, vector<1x16xf32>
    %147 = tpu.concatenate %142, %146, %11 in 0 : vector<1x16xf32>, vector<1x16xf32>, vector<6x16xf32> -> vector<8x16xf32>
    %c0_123 = arith.constant 0 : index
    %c7_124 = arith.constant 7 : index
    %148 = memref.load %arg1[%c0_123, %c7_124] : memref<2x8xi32, #tpu.memory_space<smem>>
    %c40_i32_125 = arith.constant 40 : i32
    %149 = arith.addi %c40_i32_125, %148 : i32
    %150 = arith.index_cast %149 : i32 to index
    %c0_126 = arith.constant 0 : index
    %151 = vector.load %arg2[%150, %c0_126] : memref<80x16xf32, #tpu.memory_space<vmem>>, vector<1x16xf32>
    %c1_127 = arith.constant 1 : index
    %c7_128 = arith.constant 7 : index
    %152 = memref.load %arg1[%c1_127, %c7_128] : memref<2x8xi32, #tpu.memory_space<smem>>
    %c40_i32_129 = arith.constant 40 : i32
    %153 = arith.addi %c40_i32_129, %152 : i32
    %154 = arith.index_cast %153 : i32 to index
    %c0_130 = arith.constant 0 : index
    %155 = vector.load %arg2[%154, %c0_130] : memref<80x16xf32, #tpu.memory_space<vmem>>, vector<1x16xf32>
    %156 = tpu.concatenate %151, %155, %11 in 0 : vector<1x16xf32>, vector<1x16xf32>, vector<6x16xf32> -> vector<8x16xf32>
    %157 = tpu.concatenate %93, %102, %111, %120, %129, %138, %147, %156 in 0 : vector<8x16xf32>, vector<8x16xf32>, vector<8x16xf32>, vector<8x16xf32>, vector<8x16xf32>, vector<8x16xf32>, vector<8x16xf32>, vector<8x16xf32> -> vector<64x16xf32>
    %158 = arith.truncf %84 : vector<64x16xf32> to vector<64x16xbf16>
    %159 = arith.truncf %0 : vector<16x96xf32> to vector<16x96xbf16>
    %cst_131 = arith.constant dense<0.000000e+00> : vector<64x96xf32>
    %160 = tpu.matmul %158, %159, %cst_131 {dimension_numbers = #tpu.dot_dimension_numbers<[1], [0], [0], [1], [0, 0, 1, 1], [], []>} : vector<64x16xbf16>, vector<16x96xbf16>, vector<64x96xf32> -> vector<64x96xf32>
    %161 = vector.broadcast %5 : vector<1x96xf32> to vector<64x96xf32>
    %162 = arith.addf %160, %161 : vector<64x96xf32>
    %163 = arith.truncf %1 : vector<32x96xf32> to vector<32x96xbf16>
    %cst_132 = arith.constant 0.000000e+00 : f32
    %164 = vector.broadcast %cst_132 : f32 to vector<8x32xf32>
    %165 = vector.extract_strided_slice %162 {offsets = [0, 0], sizes = [8, 96], strides = [1, 1]} : vector<64x96xf32> to vector<8x96xf32>
    %166 = arith.truncf %164 : vector<8x32xf32> to vector<8x32xbf16>
    %cst_133 = arith.constant dense<0.000000e+00> : vector<8x96xf32>
    %167 = tpu.matmul %166, %163, %cst_133 {dimension_numbers = #tpu.dot_dimension_numbers<[1], [0], [0], [1], [0, 0, 1, 1], [], []>} : vector<8x32xbf16>, vector<32x96xbf16>, vector<8x96xf32> -> vector<8x96xf32>
    %168 = vector.broadcast %6 : vector<1x96xf32> to vector<8x96xf32>
    %169 = arith.addf %167, %168 : vector<8x96xf32>
    %170 = vector.extract_strided_slice %165 {offsets = [0, 0], sizes = [8, 64], strides = [1, 1]} : vector<8x96xf32> to vector<8x64xf32>
    %171 = vector.extract_strided_slice %169 {offsets = [0, 0], sizes = [8, 64], strides = [1, 1]} : vector<8x96xf32> to vector<8x64xf32>
    %172 = arith.addf %170, %171 : vector<8x64xf32>
    %173 = arith.negf %172 : vector<8x64xf32>
    %174 = math.exp %173 : vector<8x64xf32>
    %cst_134 = arith.constant 1.000000e+00 : f32
    %175 = vector.broadcast %cst_134 : f32 to vector<8x64xf32>
    %176 = arith.addf %175, %174 : vector<8x64xf32>
    %177 = arith.divf %175, %176 : vector<8x64xf32>
    %178 = vector.extract_strided_slice %177 {offsets = [0, 0], sizes = [8, 32], strides = [1, 1]} : vector<8x64xf32> to vector<8x32xf32>
    %179 = vector.extract_strided_slice %177 {offsets = [0, 32], sizes = [8, 32], strides = [1, 1]} : vector<8x64xf32> to vector<8x32xf32>
    %180 = vector.extract_strided_slice %165 {offsets = [0, 64], sizes = [8, 32], strides = [1, 1]} : vector<8x96xf32> to vector<8x32xf32>
    %181 = vector.extract_strided_slice %169 {offsets = [0, 64], sizes = [8, 32], strides = [1, 1]} : vector<8x96xf32> to vector<8x32xf32>
    %182 = arith.mulf %178, %181 : vector<8x32xf32>
    %183 = arith.addf %180, %182 : vector<8x32xf32>
    %184 = math.tanh %183 : vector<8x32xf32>
    %185 = arith.subf %164, %184 : vector<8x32xf32>
    %186 = arith.mulf %179, %185 : vector<8x32xf32>
    %187 = arith.addf %184, %186 : vector<8x32xf32>
    %188 = vector.extract_strided_slice %162 {offsets = [8, 0], sizes = [8, 96], strides = [1, 1]} : vector<64x96xf32> to vector<8x96xf32>
    %189 = arith.truncf %187 : vector<8x32xf32> to vector<8x32xbf16>
    %cst_135 = arith.constant dense<0.000000e+00> : vector<8x96xf32>
    %190 = tpu.matmul %189, %163, %cst_135 {dimension_numbers = #tpu.dot_dimension_numbers<[1], [0], [0], [1], [0, 0, 1, 1], [], []>} : vector<8x32xbf16>, vector<32x96xbf16>, vector<8x96xf32> -> vector<8x96xf32>
    %191 = vector.broadcast %6 : vector<1x96xf32> to vector<8x96xf32>
    %192 = arith.addf %190, %191 : vector<8x96xf32>
    %193 = vector.extract_strided_slice %188 {offsets = [0, 0], sizes = [8, 64], strides = [1, 1]} : vector<8x96xf32> to vector<8x64xf32>
    %194 = vector.extract_strided_slice %192 {offsets = [0, 0], sizes = [8, 64], strides = [1, 1]} : vector<8x96xf32> to vector<8x64xf32>
    %195 = arith.addf %193, %194 : vector<8x64xf32>
    %196 = arith.negf %195 : vector<8x64xf32>
    %197 = math.exp %196 : vector<8x64xf32>
    %cst_136 = arith.constant 1.000000e+00 : f32
    %198 = vector.broadcast %cst_136 : f32 to vector<8x64xf32>
    %199 = arith.addf %198, %197 : vector<8x64xf32>
    %200 = arith.divf %198, %199 : vector<8x64xf32>
    %201 = vector.extract_strided_slice %200 {offsets = [0, 0], sizes = [8, 32], strides = [1, 1]} : vector<8x64xf32> to vector<8x32xf32>
    %202 = vector.extract_strided_slice %200 {offsets = [0, 32], sizes = [8, 32], strides = [1, 1]} : vector<8x64xf32> to vector<8x32xf32>
    %203 = vector.extract_strided_slice %188 {offsets = [0, 64], sizes = [8, 32], strides = [1, 1]} : vector<8x96xf32> to vector<8x32xf32>
    %204 = vector.extract_strided_slice %192 {offsets = [0, 64], sizes = [8, 32], strides = [1, 1]} : vector<8x96xf32> to vector<8x32xf32>
    %205 = arith.mulf %201, %204 : vector<8x32xf32>
    %206 = arith.addf %203, %205 : vector<8x32xf32>
    %207 = math.tanh %206 : vector<8x32xf32>
    %208 = arith.subf %187, %207 : vector<8x32xf32>
    %209 = arith.mulf %202, %208 : vector<8x32xf32>
    %210 = arith.addf %207, %209 : vector<8x32xf32>
    %211 = vector.extract_strided_slice %162 {offsets = [16, 0], sizes = [8, 96], strides = [1, 1]} : vector<64x96xf32> to vector<8x96xf32>
    %212 = arith.truncf %210 : vector<8x32xf32> to vector<8x32xbf16>
    %cst_137 = arith.constant dense<0.000000e+00> : vector<8x96xf32>
    %213 = tpu.matmul %212, %163, %cst_137 {dimension_numbers = #tpu.dot_dimension_numbers<[1], [0], [0], [1], [0, 0, 1, 1], [], []>} : vector<8x32xbf16>, vector<32x96xbf16>, vector<8x96xf32> -> vector<8x96xf32>
    %214 = vector.broadcast %6 : vector<1x96xf32> to vector<8x96xf32>
    %215 = arith.addf %213, %214 : vector<8x96xf32>
    %216 = vector.extract_strided_slice %211 {offsets = [0, 0], sizes = [8, 64], strides = [1, 1]} : vector<8x96xf32> to vector<8x64xf32>
    %217 = vector.extract_strided_slice %215 {offsets = [0, 0], sizes = [8, 64], strides = [1, 1]} : vector<8x96xf32> to vector<8x64xf32>
    %218 = arith.addf %216, %217 : vector<8x64xf32>
    %219 = arith.negf %218 : vector<8x64xf32>
    %220 = math.exp %219 : vector<8x64xf32>
    %cst_138 = arith.constant 1.000000e+00 : f32
    %221 = vector.broadcast %cst_138 : f32 to vector<8x64xf32>
    %222 = arith.addf %221, %220 : vector<8x64xf32>
    %223 = arith.divf %221, %222 : vector<8x64xf32>
    %224 = vector.extract_strided_slice %223 {offsets = [0, 0], sizes = [8, 32], strides = [1, 1]} : vector<8x64xf32> to vector<8x32xf32>
    %225 = vector.extract_strided_slice %223 {offsets = [0, 32], sizes = [8, 32], strides = [1, 1]} : vector<8x64xf32> to vector<8x32xf32>
    %226 = vector.extract_strided_slice %211 {offsets = [0, 64], sizes = [8, 32], strides = [1, 1]} : vector<8x96xf32> to vector<8x32xf32>
    %227 = vector.extract_strided_slice %215 {offsets = [0, 64], sizes = [8, 32], strides = [1, 1]} : vector<8x96xf32> to vector<8x32xf32>
    %228 = arith.mulf %224, %227 : vector<8x32xf32>
    %229 = arith.addf %226, %228 : vector<8x32xf32>
    %230 = math.tanh %229 : vector<8x32xf32>
    %231 = arith.subf %210, %230 : vector<8x32xf32>
    %232 = arith.mulf %225, %231 : vector<8x32xf32>
    %233 = arith.addf %230, %232 : vector<8x32xf32>
    %234 = vector.extract_strided_slice %162 {offsets = [24, 0], sizes = [8, 96], strides = [1, 1]} : vector<64x96xf32> to vector<8x96xf32>
    %235 = arith.truncf %233 : vector<8x32xf32> to vector<8x32xbf16>
    %cst_139 = arith.constant dense<0.000000e+00> : vector<8x96xf32>
    %236 = tpu.matmul %235, %163, %cst_139 {dimension_numbers = #tpu.dot_dimension_numbers<[1], [0], [0], [1], [0, 0, 1, 1], [], []>} : vector<8x32xbf16>, vector<32x96xbf16>, vector<8x96xf32> -> vector<8x96xf32>
    %237 = vector.broadcast %6 : vector<1x96xf32> to vector<8x96xf32>
    %238 = arith.addf %236, %237 : vector<8x96xf32>
    %239 = vector.extract_strided_slice %234 {offsets = [0, 0], sizes = [8, 64], strides = [1, 1]} : vector<8x96xf32> to vector<8x64xf32>
    %240 = vector.extract_strided_slice %238 {offsets = [0, 0], sizes = [8, 64], strides = [1, 1]} : vector<8x96xf32> to vector<8x64xf32>
    %241 = arith.addf %239, %240 : vector<8x64xf32>
    %242 = arith.negf %241 : vector<8x64xf32>
    %243 = math.exp %242 : vector<8x64xf32>
    %cst_140 = arith.constant 1.000000e+00 : f32
    %244 = vector.broadcast %cst_140 : f32 to vector<8x64xf32>
    %245 = arith.addf %244, %243 : vector<8x64xf32>
    %246 = arith.divf %244, %245 : vector<8x64xf32>
    %247 = vector.extract_strided_slice %246 {offsets = [0, 0], sizes = [8, 32], strides = [1, 1]} : vector<8x64xf32> to vector<8x32xf32>
    %248 = vector.extract_strided_slice %246 {offsets = [0, 32], sizes = [8, 32], strides = [1, 1]} : vector<8x64xf32> to vector<8x32xf32>
    %249 = vector.extract_strided_slice %234 {offsets = [0, 64], sizes = [8, 32], strides = [1, 1]} : vector<8x96xf32> to vector<8x32xf32>
    %250 = vector.extract_strided_slice %238 {offsets = [0, 64], sizes = [8, 32], strides = [1, 1]} : vector<8x96xf32> to vector<8x32xf32>
    %251 = arith.mulf %247, %250 : vector<8x32xf32>
    %252 = arith.addf %249, %251 : vector<8x32xf32>
    %253 = math.tanh %252 : vector<8x32xf32>
    %254 = arith.subf %233, %253 : vector<8x32xf32>
    %255 = arith.mulf %248, %254 : vector<8x32xf32>
    %256 = arith.addf %253, %255 : vector<8x32xf32>
    %257 = vector.extract_strided_slice %162 {offsets = [32, 0], sizes = [8, 96], strides = [1, 1]} : vector<64x96xf32> to vector<8x96xf32>
    %258 = arith.truncf %256 : vector<8x32xf32> to vector<8x32xbf16>
    %cst_141 = arith.constant dense<0.000000e+00> : vector<8x96xf32>
    %259 = tpu.matmul %258, %163, %cst_141 {dimension_numbers = #tpu.dot_dimension_numbers<[1], [0], [0], [1], [0, 0, 1, 1], [], []>} : vector<8x32xbf16>, vector<32x96xbf16>, vector<8x96xf32> -> vector<8x96xf32>
    %260 = vector.broadcast %6 : vector<1x96xf32> to vector<8x96xf32>
    %261 = arith.addf %259, %260 : vector<8x96xf32>
    %262 = vector.extract_strided_slice %257 {offsets = [0, 0], sizes = [8, 64], strides = [1, 1]} : vector<8x96xf32> to vector<8x64xf32>
    %263 = vector.extract_strided_slice %261 {offsets = [0, 0], sizes = [8, 64], strides = [1, 1]} : vector<8x96xf32> to vector<8x64xf32>
    %264 = arith.addf %262, %263 : vector<8x64xf32>
    %265 = arith.negf %264 : vector<8x64xf32>
    %266 = math.exp %265 : vector<8x64xf32>
    %cst_142 = arith.constant 1.000000e+00 : f32
    %267 = vector.broadcast %cst_142 : f32 to vector<8x64xf32>
    %268 = arith.addf %267, %266 : vector<8x64xf32>
    %269 = arith.divf %267, %268 : vector<8x64xf32>
    %270 = vector.extract_strided_slice %269 {offsets = [0, 0], sizes = [8, 32], strides = [1, 1]} : vector<8x64xf32> to vector<8x32xf32>
    %271 = vector.extract_strided_slice %269 {offsets = [0, 32], sizes = [8, 32], strides = [1, 1]} : vector<8x64xf32> to vector<8x32xf32>
    %272 = vector.extract_strided_slice %257 {offsets = [0, 64], sizes = [8, 32], strides = [1, 1]} : vector<8x96xf32> to vector<8x32xf32>
    %273 = vector.extract_strided_slice %261 {offsets = [0, 64], sizes = [8, 32], strides = [1, 1]} : vector<8x96xf32> to vector<8x32xf32>
    %274 = arith.mulf %270, %273 : vector<8x32xf32>
    %275 = arith.addf %272, %274 : vector<8x32xf32>
    %276 = math.tanh %275 : vector<8x32xf32>
    %277 = arith.subf %256, %276 : vector<8x32xf32>
    %278 = arith.mulf %271, %277 : vector<8x32xf32>
    %279 = arith.addf %276, %278 : vector<8x32xf32>
    %280 = vector.extract_strided_slice %162 {offsets = [40, 0], sizes = [8, 96], strides = [1, 1]} : vector<64x96xf32> to vector<8x96xf32>
    %281 = arith.truncf %279 : vector<8x32xf32> to vector<8x32xbf16>
    %cst_143 = arith.constant dense<0.000000e+00> : vector<8x96xf32>
    %282 = tpu.matmul %281, %163, %cst_143 {dimension_numbers = #tpu.dot_dimension_numbers<[1], [0], [0], [1], [0, 0, 1, 1], [], []>} : vector<8x32xbf16>, vector<32x96xbf16>, vector<8x96xf32> -> vector<8x96xf32>
    %283 = vector.broadcast %6 : vector<1x96xf32> to vector<8x96xf32>
    %284 = arith.addf %282, %283 : vector<8x96xf32>
    %285 = vector.extract_strided_slice %280 {offsets = [0, 0], sizes = [8, 64], strides = [1, 1]} : vector<8x96xf32> to vector<8x64xf32>
    %286 = vector.extract_strided_slice %284 {offsets = [0, 0], sizes = [8, 64], strides = [1, 1]} : vector<8x96xf32> to vector<8x64xf32>
    %287 = arith.addf %285, %286 : vector<8x64xf32>
    %288 = arith.negf %287 : vector<8x64xf32>
    %289 = math.exp %288 : vector<8x64xf32>
    %cst_144 = arith.constant 1.000000e+00 : f32
    %290 = vector.broadcast %cst_144 : f32 to vector<8x64xf32>
    %291 = arith.addf %290, %289 : vector<8x64xf32>
    %292 = arith.divf %290, %291 : vector<8x64xf32>
    %293 = vector.extract_strided_slice %292 {offsets = [0, 0], sizes = [8, 32], strides = [1, 1]} : vector<8x64xf32> to vector<8x32xf32>
    %294 = vector.extract_strided_slice %292 {offsets = [0, 32], sizes = [8, 32], strides = [1, 1]} : vector<8x64xf32> to vector<8x32xf32>
    %295 = vector.extract_strided_slice %280 {offsets = [0, 64], sizes = [8, 32], strides = [1, 1]} : vector<8x96xf32> to vector<8x32xf32>
    %296 = vector.extract_strided_slice %284 {offsets = [0, 64], sizes = [8, 32], strides = [1, 1]} : vector<8x96xf32> to vector<8x32xf32>
    %297 = arith.mulf %293, %296 : vector<8x32xf32>
    %298 = arith.addf %295, %297 : vector<8x32xf32>
    %299 = math.tanh %298 : vector<8x32xf32>
    %300 = arith.subf %279, %299 : vector<8x32xf32>
    %301 = arith.mulf %294, %300 : vector<8x32xf32>
    %302 = arith.addf %299, %301 : vector<8x32xf32>
    %303 = vector.extract_strided_slice %162 {offsets = [48, 0], sizes = [8, 96], strides = [1, 1]} : vector<64x96xf32> to vector<8x96xf32>
    %304 = arith.truncf %302 : vector<8x32xf32> to vector<8x32xbf16>
    %cst_145 = arith.constant dense<0.000000e+00> : vector<8x96xf32>
    %305 = tpu.matmul %304, %163, %cst_145 {dimension_numbers = #tpu.dot_dimension_numbers<[1], [0], [0], [1], [0, 0, 1, 1], [], []>} : vector<8x32xbf16>, vector<32x96xbf16>, vector<8x96xf32> -> vector<8x96xf32>
    %306 = vector.broadcast %6 : vector<1x96xf32> to vector<8x96xf32>
    %307 = arith.addf %305, %306 : vector<8x96xf32>
    %308 = vector.extract_strided_slice %303 {offsets = [0, 0], sizes = [8, 64], strides = [1, 1]} : vector<8x96xf32> to vector<8x64xf32>
    %309 = vector.extract_strided_slice %307 {offsets = [0, 0], sizes = [8, 64], strides = [1, 1]} : vector<8x96xf32> to vector<8x64xf32>
    %310 = arith.addf %308, %309 : vector<8x64xf32>
    %311 = arith.negf %310 : vector<8x64xf32>
    %312 = math.exp %311 : vector<8x64xf32>
    %cst_146 = arith.constant 1.000000e+00 : f32
    %313 = vector.broadcast %cst_146 : f32 to vector<8x64xf32>
    %314 = arith.addf %313, %312 : vector<8x64xf32>
    %315 = arith.divf %313, %314 : vector<8x64xf32>
    %316 = vector.extract_strided_slice %315 {offsets = [0, 0], sizes = [8, 32], strides = [1, 1]} : vector<8x64xf32> to vector<8x32xf32>
    %317 = vector.extract_strided_slice %315 {offsets = [0, 32], sizes = [8, 32], strides = [1, 1]} : vector<8x64xf32> to vector<8x32xf32>
    %318 = vector.extract_strided_slice %303 {offsets = [0, 64], sizes = [8, 32], strides = [1, 1]} : vector<8x96xf32> to vector<8x32xf32>
    %319 = vector.extract_strided_slice %307 {offsets = [0, 64], sizes = [8, 32], strides = [1, 1]} : vector<8x96xf32> to vector<8x32xf32>
    %320 = arith.mulf %316, %319 : vector<8x32xf32>
    %321 = arith.addf %318, %320 : vector<8x32xf32>
    %322 = math.tanh %321 : vector<8x32xf32>
    %323 = arith.subf %302, %322 : vector<8x32xf32>
    %324 = arith.mulf %317, %323 : vector<8x32xf32>
    %325 = arith.addf %322, %324 : vector<8x32xf32>
    %326 = vector.extract_strided_slice %162 {offsets = [56, 0], sizes = [8, 96], strides = [1, 1]} : vector<64x96xf32> to vector<8x96xf32>
    %327 = arith.truncf %325 : vector<8x32xf32> to vector<8x32xbf16>
    %cst_147 = arith.constant dense<0.000000e+00> : vector<8x96xf32>
    %328 = tpu.matmul %327, %163, %cst_147 {dimension_numbers = #tpu.dot_dimension_numbers<[1], [0], [0], [1], [0, 0, 1, 1], [], []>} : vector<8x32xbf16>, vector<32x96xbf16>, vector<8x96xf32> -> vector<8x96xf32>
    %329 = vector.broadcast %6 : vector<1x96xf32> to vector<8x96xf32>
    %330 = arith.addf %328, %329 : vector<8x96xf32>
    %331 = vector.extract_strided_slice %326 {offsets = [0, 0], sizes = [8, 64], strides = [1, 1]} : vector<8x96xf32> to vector<8x64xf32>
    %332 = vector.extract_strided_slice %330 {offsets = [0, 0], sizes = [8, 64], strides = [1, 1]} : vector<8x96xf32> to vector<8x64xf32>
    %333 = arith.addf %331, %332 : vector<8x64xf32>
    %334 = arith.negf %333 : vector<8x64xf32>
    %335 = math.exp %334 : vector<8x64xf32>
    %cst_148 = arith.constant 1.000000e+00 : f32
    %336 = vector.broadcast %cst_148 : f32 to vector<8x64xf32>
    %337 = arith.addf %336, %335 : vector<8x64xf32>
    %338 = arith.divf %336, %337 : vector<8x64xf32>
    %339 = vector.extract_strided_slice %338 {offsets = [0, 0], sizes = [8, 32], strides = [1, 1]} : vector<8x64xf32> to vector<8x32xf32>
    %340 = vector.extract_strided_slice %338 {offsets = [0, 32], sizes = [8, 32], strides = [1, 1]} : vector<8x64xf32> to vector<8x32xf32>
    %341 = vector.extract_strided_slice %326 {offsets = [0, 64], sizes = [8, 32], strides = [1, 1]} : vector<8x96xf32> to vector<8x32xf32>
    %342 = vector.extract_strided_slice %330 {offsets = [0, 64], sizes = [8, 32], strides = [1, 1]} : vector<8x96xf32> to vector<8x32xf32>
    %343 = arith.mulf %339, %342 : vector<8x32xf32>
    %344 = arith.addf %341, %343 : vector<8x32xf32>
    %345 = math.tanh %344 : vector<8x32xf32>
    %346 = arith.subf %325, %345 : vector<8x32xf32>
    %347 = arith.mulf %340, %346 : vector<8x32xf32>
    %348 = arith.addf %345, %347 : vector<8x32xf32>
    %349 = arith.truncf %157 : vector<64x16xf32> to vector<64x16xbf16>
    %350 = arith.truncf %2 : vector<16x96xf32> to vector<16x96xbf16>
    %cst_149 = arith.constant dense<0.000000e+00> : vector<64x96xf32>
    %351 = tpu.matmul %349, %350, %cst_149 {dimension_numbers = #tpu.dot_dimension_numbers<[1], [0], [0], [1], [0, 0, 1, 1], [], []>} : vector<64x16xbf16>, vector<16x96xbf16>, vector<64x96xf32> -> vector<64x96xf32>
    %352 = vector.broadcast %7 : vector<1x96xf32> to vector<64x96xf32>
    %353 = arith.addf %351, %352 : vector<64x96xf32>
    %354 = arith.truncf %348 : vector<8x32xf32> to vector<8x32xbf16>
    %355 = arith.truncf %3 : vector<32x96xf32> to vector<32x96xbf16>
    %cst_150 = arith.constant dense<0.000000e+00> : vector<8x96xf32>
    %356 = tpu.matmul %354, %355, %cst_150 {dimension_numbers = #tpu.dot_dimension_numbers<[1], [0], [0], [1], [0, 0, 1, 1], [], []>} : vector<8x32xbf16>, vector<32x96xbf16>, vector<8x96xf32> -> vector<8x96xf32>
    %357 = arith.truncf %4 : vector<32x96xf32> to vector<32x96xbf16>
    %358 = vector.extract_strided_slice %353 {offsets = [0, 0], sizes = [8, 96], strides = [1, 1]} : vector<64x96xf32> to vector<8x96xf32>
    %359 = arith.addf %358, %356 : vector<8x96xf32>
    %360 = arith.truncf %348 : vector<8x32xf32> to vector<8x32xbf16>
    %cst_151 = arith.constant dense<0.000000e+00> : vector<8x96xf32>
    %361 = tpu.matmul %360, %357, %cst_151 {dimension_numbers = #tpu.dot_dimension_numbers<[1], [0], [0], [1], [0, 0, 1, 1], [], []>} : vector<8x32xbf16>, vector<32x96xbf16>, vector<8x96xf32> -> vector<8x96xf32>
    %362 = vector.broadcast %8 : vector<1x96xf32> to vector<8x96xf32>
    %363 = arith.addf %361, %362 : vector<8x96xf32>
    %364 = vector.extract_strided_slice %359 {offsets = [0, 0], sizes = [8, 64], strides = [1, 1]} : vector<8x96xf32> to vector<8x64xf32>
    %365 = vector.extract_strided_slice %363 {offsets = [0, 0], sizes = [8, 64], strides = [1, 1]} : vector<8x96xf32> to vector<8x64xf32>
    %366 = arith.addf %364, %365 : vector<8x64xf32>
    %367 = arith.negf %366 : vector<8x64xf32>
    %368 = math.exp %367 : vector<8x64xf32>
    %cst_152 = arith.constant 1.000000e+00 : f32
    %369 = vector.broadcast %cst_152 : f32 to vector<8x64xf32>
    %370 = arith.addf %369, %368 : vector<8x64xf32>
    %371 = arith.divf %369, %370 : vector<8x64xf32>
    %372 = vector.extract_strided_slice %371 {offsets = [0, 0], sizes = [8, 32], strides = [1, 1]} : vector<8x64xf32> to vector<8x32xf32>
    %373 = vector.extract_strided_slice %371 {offsets = [0, 32], sizes = [8, 32], strides = [1, 1]} : vector<8x64xf32> to vector<8x32xf32>
    %374 = vector.extract_strided_slice %359 {offsets = [0, 64], sizes = [8, 32], strides = [1, 1]} : vector<8x96xf32> to vector<8x32xf32>
    %375 = vector.extract_strided_slice %363 {offsets = [0, 64], sizes = [8, 32], strides = [1, 1]} : vector<8x96xf32> to vector<8x32xf32>
    %376 = arith.mulf %372, %375 : vector<8x32xf32>
    %377 = arith.addf %374, %376 : vector<8x32xf32>
    %378 = math.tanh %377 : vector<8x32xf32>
    %379 = arith.subf %348, %378 : vector<8x32xf32>
    %380 = arith.mulf %373, %379 : vector<8x32xf32>
    %381 = arith.addf %378, %380 : vector<8x32xf32>
    %382 = vector.extract_strided_slice %353 {offsets = [8, 0], sizes = [8, 96], strides = [1, 1]} : vector<64x96xf32> to vector<8x96xf32>
    %383 = arith.addf %382, %356 : vector<8x96xf32>
    %384 = arith.truncf %381 : vector<8x32xf32> to vector<8x32xbf16>
    %cst_153 = arith.constant dense<0.000000e+00> : vector<8x96xf32>
    %385 = tpu.matmul %384, %357, %cst_153 {dimension_numbers = #tpu.dot_dimension_numbers<[1], [0], [0], [1], [0, 0, 1, 1], [], []>} : vector<8x32xbf16>, vector<32x96xbf16>, vector<8x96xf32> -> vector<8x96xf32>
    %386 = vector.broadcast %8 : vector<1x96xf32> to vector<8x96xf32>
    %387 = arith.addf %385, %386 : vector<8x96xf32>
    %388 = vector.extract_strided_slice %383 {offsets = [0, 0], sizes = [8, 64], strides = [1, 1]} : vector<8x96xf32> to vector<8x64xf32>
    %389 = vector.extract_strided_slice %387 {offsets = [0, 0], sizes = [8, 64], strides = [1, 1]} : vector<8x96xf32> to vector<8x64xf32>
    %390 = arith.addf %388, %389 : vector<8x64xf32>
    %391 = arith.negf %390 : vector<8x64xf32>
    %392 = math.exp %391 : vector<8x64xf32>
    %cst_154 = arith.constant 1.000000e+00 : f32
    %393 = vector.broadcast %cst_154 : f32 to vector<8x64xf32>
    %394 = arith.addf %393, %392 : vector<8x64xf32>
    %395 = arith.divf %393, %394 : vector<8x64xf32>
    %396 = vector.extract_strided_slice %395 {offsets = [0, 0], sizes = [8, 32], strides = [1, 1]} : vector<8x64xf32> to vector<8x32xf32>
    %397 = vector.extract_strided_slice %395 {offsets = [0, 32], sizes = [8, 32], strides = [1, 1]} : vector<8x64xf32> to vector<8x32xf32>
    %398 = vector.extract_strided_slice %383 {offsets = [0, 64], sizes = [8, 32], strides = [1, 1]} : vector<8x96xf32> to vector<8x32xf32>
    %399 = vector.extract_strided_slice %387 {offsets = [0, 64], sizes = [8, 32], strides = [1, 1]} : vector<8x96xf32> to vector<8x32xf32>
    %400 = arith.mulf %396, %399 : vector<8x32xf32>
    %401 = arith.addf %398, %400 : vector<8x32xf32>
    %402 = math.tanh %401 : vector<8x32xf32>
    %403 = arith.subf %381, %402 : vector<8x32xf32>
    %404 = arith.mulf %397, %403 : vector<8x32xf32>
    %405 = arith.addf %402, %404 : vector<8x32xf32>
    %406 = vector.extract_strided_slice %353 {offsets = [16, 0], sizes = [8, 96], strides = [1, 1]} : vector<64x96xf32> to vector<8x96xf32>
    %407 = arith.addf %406, %356 : vector<8x96xf32>
    %408 = arith.truncf %405 : vector<8x32xf32> to vector<8x32xbf16>
    %cst_155 = arith.constant dense<0.000000e+00> : vector<8x96xf32>
    %409 = tpu.matmul %408, %357, %cst_155 {dimension_numbers = #tpu.dot_dimension_numbers<[1], [0], [0], [1], [0, 0, 1, 1], [], []>} : vector<8x32xbf16>, vector<32x96xbf16>, vector<8x96xf32> -> vector<8x96xf32>
    %410 = vector.broadcast %8 : vector<1x96xf32> to vector<8x96xf32>
    %411 = arith.addf %409, %410 : vector<8x96xf32>
    %412 = vector.extract_strided_slice %407 {offsets = [0, 0], sizes = [8, 64], strides = [1, 1]} : vector<8x96xf32> to vector<8x64xf32>
    %413 = vector.extract_strided_slice %411 {offsets = [0, 0], sizes = [8, 64], strides = [1, 1]} : vector<8x96xf32> to vector<8x64xf32>
    %414 = arith.addf %412, %413 : vector<8x64xf32>
    %415 = arith.negf %414 : vector<8x64xf32>
    %416 = math.exp %415 : vector<8x64xf32>
    %cst_156 = arith.constant 1.000000e+00 : f32
    %417 = vector.broadcast %cst_156 : f32 to vector<8x64xf32>
    %418 = arith.addf %417, %416 : vector<8x64xf32>
    %419 = arith.divf %417, %418 : vector<8x64xf32>
    %420 = vector.extract_strided_slice %419 {offsets = [0, 0], sizes = [8, 32], strides = [1, 1]} : vector<8x64xf32> to vector<8x32xf32>
    %421 = vector.extract_strided_slice %419 {offsets = [0, 32], sizes = [8, 32], strides = [1, 1]} : vector<8x64xf32> to vector<8x32xf32>
    %422 = vector.extract_strided_slice %407 {offsets = [0, 64], sizes = [8, 32], strides = [1, 1]} : vector<8x96xf32> to vector<8x32xf32>
    %423 = vector.extract_strided_slice %411 {offsets = [0, 64], sizes = [8, 32], strides = [1, 1]} : vector<8x96xf32> to vector<8x32xf32>
    %424 = arith.mulf %420, %423 : vector<8x32xf32>
    %425 = arith.addf %422, %424 : vector<8x32xf32>
    %426 = math.tanh %425 : vector<8x32xf32>
    %427 = arith.subf %405, %426 : vector<8x32xf32>
    %428 = arith.mulf %421, %427 : vector<8x32xf32>
    %429 = arith.addf %426, %428 : vector<8x32xf32>
    %430 = vector.extract_strided_slice %353 {offsets = [24, 0], sizes = [8, 96], strides = [1, 1]} : vector<64x96xf32> to vector<8x96xf32>
    %431 = arith.addf %430, %356 : vector<8x96xf32>
    %432 = arith.truncf %429 : vector<8x32xf32> to vector<8x32xbf16>
    %cst_157 = arith.constant dense<0.000000e+00> : vector<8x96xf32>
    %433 = tpu.matmul %432, %357, %cst_157 {dimension_numbers = #tpu.dot_dimension_numbers<[1], [0], [0], [1], [0, 0, 1, 1], [], []>} : vector<8x32xbf16>, vector<32x96xbf16>, vector<8x96xf32> -> vector<8x96xf32>
    %434 = vector.broadcast %8 : vector<1x96xf32> to vector<8x96xf32>
    %435 = arith.addf %433, %434 : vector<8x96xf32>
    %436 = vector.extract_strided_slice %431 {offsets = [0, 0], sizes = [8, 64], strides = [1, 1]} : vector<8x96xf32> to vector<8x64xf32>
    %437 = vector.extract_strided_slice %435 {offsets = [0, 0], sizes = [8, 64], strides = [1, 1]} : vector<8x96xf32> to vector<8x64xf32>
    %438 = arith.addf %436, %437 : vector<8x64xf32>
    %439 = arith.negf %438 : vector<8x64xf32>
    %440 = math.exp %439 : vector<8x64xf32>
    %cst_158 = arith.constant 1.000000e+00 : f32
    %441 = vector.broadcast %cst_158 : f32 to vector<8x64xf32>
    %442 = arith.addf %441, %440 : vector<8x64xf32>
    %443 = arith.divf %441, %442 : vector<8x64xf32>
    %444 = vector.extract_strided_slice %443 {offsets = [0, 0], sizes = [8, 32], strides = [1, 1]} : vector<8x64xf32> to vector<8x32xf32>
    %445 = vector.extract_strided_slice %443 {offsets = [0, 32], sizes = [8, 32], strides = [1, 1]} : vector<8x64xf32> to vector<8x32xf32>
    %446 = vector.extract_strided_slice %431 {offsets = [0, 64], sizes = [8, 32], strides = [1, 1]} : vector<8x96xf32> to vector<8x32xf32>
    %447 = vector.extract_strided_slice %435 {offsets = [0, 64], sizes = [8, 32], strides = [1, 1]} : vector<8x96xf32> to vector<8x32xf32>
    %448 = arith.mulf %444, %447 : vector<8x32xf32>
    %449 = arith.addf %446, %448 : vector<8x32xf32>
    %450 = math.tanh %449 : vector<8x32xf32>
    %451 = arith.subf %429, %450 : vector<8x32xf32>
    %452 = arith.mulf %445, %451 : vector<8x32xf32>
    %453 = arith.addf %450, %452 : vector<8x32xf32>
    %454 = vector.extract_strided_slice %353 {offsets = [32, 0], sizes = [8, 96], strides = [1, 1]} : vector<64x96xf32> to vector<8x96xf32>
    %455 = arith.addf %454, %356 : vector<8x96xf32>
    %456 = arith.truncf %453 : vector<8x32xf32> to vector<8x32xbf16>
    %cst_159 = arith.constant dense<0.000000e+00> : vector<8x96xf32>
    %457 = tpu.matmul %456, %357, %cst_159 {dimension_numbers = #tpu.dot_dimension_numbers<[1], [0], [0], [1], [0, 0, 1, 1], [], []>} : vector<8x32xbf16>, vector<32x96xbf16>, vector<8x96xf32> -> vector<8x96xf32>
    %458 = vector.broadcast %8 : vector<1x96xf32> to vector<8x96xf32>
    %459 = arith.addf %457, %458 : vector<8x96xf32>
    %460 = vector.extract_strided_slice %455 {offsets = [0, 0], sizes = [8, 64], strides = [1, 1]} : vector<8x96xf32> to vector<8x64xf32>
    %461 = vector.extract_strided_slice %459 {offsets = [0, 0], sizes = [8, 64], strides = [1, 1]} : vector<8x96xf32> to vector<8x64xf32>
    %462 = arith.addf %460, %461 : vector<8x64xf32>
    %463 = arith.negf %462 : vector<8x64xf32>
    %464 = math.exp %463 : vector<8x64xf32>
    %cst_160 = arith.constant 1.000000e+00 : f32
    %465 = vector.broadcast %cst_160 : f32 to vector<8x64xf32>
    %466 = arith.addf %465, %464 : vector<8x64xf32>
    %467 = arith.divf %465, %466 : vector<8x64xf32>
    %468 = vector.extract_strided_slice %467 {offsets = [0, 0], sizes = [8, 32], strides = [1, 1]} : vector<8x64xf32> to vector<8x32xf32>
    %469 = vector.extract_strided_slice %467 {offsets = [0, 32], sizes = [8, 32], strides = [1, 1]} : vector<8x64xf32> to vector<8x32xf32>
    %470 = vector.extract_strided_slice %455 {offsets = [0, 64], sizes = [8, 32], strides = [1, 1]} : vector<8x96xf32> to vector<8x32xf32>
    %471 = vector.extract_strided_slice %459 {offsets = [0, 64], sizes = [8, 32], strides = [1, 1]} : vector<8x96xf32> to vector<8x32xf32>
    %472 = arith.mulf %468, %471 : vector<8x32xf32>
    %473 = arith.addf %470, %472 : vector<8x32xf32>
    %474 = math.tanh %473 : vector<8x32xf32>
    %475 = arith.subf %453, %474 : vector<8x32xf32>
    %476 = arith.mulf %469, %475 : vector<8x32xf32>
    %477 = arith.addf %474, %476 : vector<8x32xf32>
    %478 = vector.extract_strided_slice %353 {offsets = [40, 0], sizes = [8, 96], strides = [1, 1]} : vector<64x96xf32> to vector<8x96xf32>
    %479 = arith.addf %478, %356 : vector<8x96xf32>
    %480 = arith.truncf %477 : vector<8x32xf32> to vector<8x32xbf16>
    %cst_161 = arith.constant dense<0.000000e+00> : vector<8x96xf32>
    %481 = tpu.matmul %480, %357, %cst_161 {dimension_numbers = #tpu.dot_dimension_numbers<[1], [0], [0], [1], [0, 0, 1, 1], [], []>} : vector<8x32xbf16>, vector<32x96xbf16>, vector<8x96xf32> -> vector<8x96xf32>
    %482 = vector.broadcast %8 : vector<1x96xf32> to vector<8x96xf32>
    %483 = arith.addf %481, %482 : vector<8x96xf32>
    %484 = vector.extract_strided_slice %479 {offsets = [0, 0], sizes = [8, 64], strides = [1, 1]} : vector<8x96xf32> to vector<8x64xf32>
    %485 = vector.extract_strided_slice %483 {offsets = [0, 0], sizes = [8, 64], strides = [1, 1]} : vector<8x96xf32> to vector<8x64xf32>
    %486 = arith.addf %484, %485 : vector<8x64xf32>
    %487 = arith.negf %486 : vector<8x64xf32>
    %488 = math.exp %487 : vector<8x64xf32>
    %cst_162 = arith.constant 1.000000e+00 : f32
    %489 = vector.broadcast %cst_162 : f32 to vector<8x64xf32>
    %490 = arith.addf %489, %488 : vector<8x64xf32>
    %491 = arith.divf %489, %490 : vector<8x64xf32>
    %492 = vector.extract_strided_slice %491 {offsets = [0, 0], sizes = [8, 32], strides = [1, 1]} : vector<8x64xf32> to vector<8x32xf32>
    %493 = vector.extract_strided_slice %491 {offsets = [0, 32], sizes = [8, 32], strides = [1, 1]} : vector<8x64xf32> to vector<8x32xf32>
    %494 = vector.extract_strided_slice %479 {offsets = [0, 64], sizes = [8, 32], strides = [1, 1]} : vector<8x96xf32> to vector<8x32xf32>
    %495 = vector.extract_strided_slice %483 {offsets = [0, 64], sizes = [8, 32], strides = [1, 1]} : vector<8x96xf32> to vector<8x32xf32>
    %496 = arith.mulf %492, %495 : vector<8x32xf32>
    %497 = arith.addf %494, %496 : vector<8x32xf32>
    %498 = math.tanh %497 : vector<8x32xf32>
    %499 = arith.subf %477, %498 : vector<8x32xf32>
    %500 = arith.mulf %493, %499 : vector<8x32xf32>
    %501 = arith.addf %498, %500 : vector<8x32xf32>
    %502 = vector.extract_strided_slice %353 {offsets = [48, 0], sizes = [8, 96], strides = [1, 1]} : vector<64x96xf32> to vector<8x96xf32>
    %503 = arith.addf %502, %356 : vector<8x96xf32>
    %504 = arith.truncf %501 : vector<8x32xf32> to vector<8x32xbf16>
    %cst_163 = arith.constant dense<0.000000e+00> : vector<8x96xf32>
    %505 = tpu.matmul %504, %357, %cst_163 {dimension_numbers = #tpu.dot_dimension_numbers<[1], [0], [0], [1], [0, 0, 1, 1], [], []>} : vector<8x32xbf16>, vector<32x96xbf16>, vector<8x96xf32> -> vector<8x96xf32>
    %506 = vector.broadcast %8 : vector<1x96xf32> to vector<8x96xf32>
    %507 = arith.addf %505, %506 : vector<8x96xf32>
    %508 = vector.extract_strided_slice %503 {offsets = [0, 0], sizes = [8, 64], strides = [1, 1]} : vector<8x96xf32> to vector<8x64xf32>
    %509 = vector.extract_strided_slice %507 {offsets = [0, 0], sizes = [8, 64], strides = [1, 1]} : vector<8x96xf32> to vector<8x64xf32>
    %510 = arith.addf %508, %509 : vector<8x64xf32>
    %511 = arith.negf %510 : vector<8x64xf32>
    %512 = math.exp %511 : vector<8x64xf32>
    %cst_164 = arith.constant 1.000000e+00 : f32
    %513 = vector.broadcast %cst_164 : f32 to vector<8x64xf32>
    %514 = arith.addf %513, %512 : vector<8x64xf32>
    %515 = arith.divf %513, %514 : vector<8x64xf32>
    %516 = vector.extract_strided_slice %515 {offsets = [0, 0], sizes = [8, 32], strides = [1, 1]} : vector<8x64xf32> to vector<8x32xf32>
    %517 = vector.extract_strided_slice %515 {offsets = [0, 32], sizes = [8, 32], strides = [1, 1]} : vector<8x64xf32> to vector<8x32xf32>
    %518 = vector.extract_strided_slice %503 {offsets = [0, 64], sizes = [8, 32], strides = [1, 1]} : vector<8x96xf32> to vector<8x32xf32>
    %519 = vector.extract_strided_slice %507 {offsets = [0, 64], sizes = [8, 32], strides = [1, 1]} : vector<8x96xf32> to vector<8x32xf32>
    %520 = arith.mulf %516, %519 : vector<8x32xf32>
    %521 = arith.addf %518, %520 : vector<8x32xf32>
    %522 = math.tanh %521 : vector<8x32xf32>
    %523 = arith.subf %501, %522 : vector<8x32xf32>
    %524 = arith.mulf %517, %523 : vector<8x32xf32>
    %525 = arith.addf %522, %524 : vector<8x32xf32>
    %526 = vector.extract_strided_slice %353 {offsets = [56, 0], sizes = [8, 96], strides = [1, 1]} : vector<64x96xf32> to vector<8x96xf32>
    %527 = arith.addf %526, %356 : vector<8x96xf32>
    %528 = arith.truncf %525 : vector<8x32xf32> to vector<8x32xbf16>
    %cst_165 = arith.constant dense<0.000000e+00> : vector<8x96xf32>
    %529 = tpu.matmul %528, %357, %cst_165 {dimension_numbers = #tpu.dot_dimension_numbers<[1], [0], [0], [1], [0, 0, 1, 1], [], []>} : vector<8x32xbf16>, vector<32x96xbf16>, vector<8x96xf32> -> vector<8x96xf32>
    %530 = vector.broadcast %8 : vector<1x96xf32> to vector<8x96xf32>
    %531 = arith.addf %529, %530 : vector<8x96xf32>
    %532 = vector.extract_strided_slice %527 {offsets = [0, 0], sizes = [8, 64], strides = [1, 1]} : vector<8x96xf32> to vector<8x64xf32>
    %533 = vector.extract_strided_slice %531 {offsets = [0, 0], sizes = [8, 64], strides = [1, 1]} : vector<8x96xf32> to vector<8x64xf32>
    %534 = arith.addf %532, %533 : vector<8x64xf32>
    %535 = arith.negf %534 : vector<8x64xf32>
    %536 = math.exp %535 : vector<8x64xf32>
    %cst_166 = arith.constant 1.000000e+00 : f32
    %537 = vector.broadcast %cst_166 : f32 to vector<8x64xf32>
    %538 = arith.addf %537, %536 : vector<8x64xf32>
    %539 = arith.divf %537, %538 : vector<8x64xf32>
    %540 = vector.extract_strided_slice %539 {offsets = [0, 0], sizes = [8, 32], strides = [1, 1]} : vector<8x64xf32> to vector<8x32xf32>
    %541 = vector.extract_strided_slice %539 {offsets = [0, 32], sizes = [8, 32], strides = [1, 1]} : vector<8x64xf32> to vector<8x32xf32>
    %542 = vector.extract_strided_slice %527 {offsets = [0, 64], sizes = [8, 32], strides = [1, 1]} : vector<8x96xf32> to vector<8x32xf32>
    %543 = vector.extract_strided_slice %531 {offsets = [0, 64], sizes = [8, 32], strides = [1, 1]} : vector<8x96xf32> to vector<8x32xf32>
    %544 = arith.mulf %540, %543 : vector<8x32xf32>
    %545 = arith.addf %542, %544 : vector<8x32xf32>
    %546 = math.tanh %545 : vector<8x32xf32>
    %547 = arith.subf %525, %546 : vector<8x32xf32>
    %548 = arith.mulf %541, %547 : vector<8x32xf32>
    %549 = arith.addf %546, %548 : vector<8x32xf32>
    %550 = tpu.concatenate %381, %405, %429, %453, %477, %501, %525, %549 in 0 : vector<8x32xf32>, vector<8x32xf32>, vector<8x32xf32>, vector<8x32xf32>, vector<8x32xf32>, vector<8x32xf32>, vector<8x32xf32>, vector<8x32xf32> -> vector<64x32xf32>
    %551 = arith.truncf %550 : vector<64x32xf32> to vector<64x32xbf16>
    %552 = arith.truncf %9 : vector<32x40xf32> to vector<32x40xbf16>
    %cst_167 = arith.constant dense<0.000000e+00> : vector<64x40xf32>
    %553 = tpu.matmul %551, %552, %cst_167 {dimension_numbers = #tpu.dot_dimension_numbers<[1], [0], [0], [1], [0, 0, 1, 1], [], []>} : vector<64x32xbf16>, vector<32x40xbf16>, vector<64x40xf32> -> vector<64x40xf32>
    %554 = vector.broadcast %10 : vector<1x40xf32> to vector<64x40xf32>
    %555 = arith.addf %553, %554 : vector<64x40xf32>
    %556 = vector.shape_cast %555 : vector<64x40xf32> to vector<8x8x40xf32>
    %557 = vector.extract_strided_slice %556 {offsets = [0, 0, 0], sizes = [8, 1, 40], strides = [1, 1, 1]} : vector<8x8x40xf32> to vector<8x1x40xf32>
    %558 = vector.shape_cast %557 : vector<8x1x40xf32> to vector<8x40xf32>
    %c0_168 = arith.constant 0 : index
    %c0_169 = arith.constant 0 : index
    %c0_170 = arith.constant 0 : index
    %559 = vector.load %arg5[%c0_168, %c0_169, %c0_170] : memref<2x8x40xf32, #tpu.memory_space<vmem>>, vector<1x8x40xf32>
    %560 = vector.shape_cast %559 : vector<1x8x40xf32> to vector<8x40xf32>
    %561 = vector.shape_cast %558 : vector<8x40xf32> to vector<1x8x40xf32>
    tpu.vector_store %arg5[%c0_168, %c0_169, %c0_170], %561 {strides = array<i32>} : memref<2x8x40xf32, #tpu.memory_space<vmem>>, vector<1x8x40xf32>,
    %562 = vector.extract_strided_slice %556 {offsets = [0, 1, 0], sizes = [8, 1, 40], strides = [1, 1, 1]} : vector<8x8x40xf32> to vector<8x1x40xf32>
    %563 = vector.shape_cast %562 : vector<8x1x40xf32> to vector<8x40xf32>
    %c1_171 = arith.constant 1 : index
    %c0_172 = arith.constant 0 : index
    %c0_173 = arith.constant 0 : index
    %564 = vector.load %arg5[%c1_171, %c0_172, %c0_173] : memref<2x8x40xf32, #tpu.memory_space<vmem>>, vector<1x8x40xf32>
    %565 = vector.shape_cast %564 : vector<1x8x40xf32> to vector<8x40xf32>
    %566 = vector.shape_cast %563 : vector<8x40xf32> to vector<1x8x40xf32>
    tpu.vector_store %arg5[%c1_171, %c0_172, %c0_173], %566 {strides = array<i32>} : memref<2x8x40xf32, #tpu.memory_space<vmem>>, vector<1x8x40xf32>,
    %567 = vector.extract_strided_slice %549 {offsets = [0, 0], sizes = [2, 32], strides = [1, 1]} : vector<8x32xf32> to vector<2x32xf32>
    %c0_174 = arith.constant 0 : index
    %c0_175 = arith.constant 0 : index
    %568 = vector.load %arg6[%c0_174, %c0_175] : memref<2x32xf32, #tpu.memory_space<vmem>>, vector<2x32xf32>
    tpu.vector_store %arg6[%c0_174, %c0_175], %567 {strides = array<i32>} : memref<2x32xf32, #tpu.memory_space<vmem>>, vector<2x32xf32>,
    return
  }
}

</mosaic_0001>

<llo_original>
// kernel: encoder_decoder_forward.1
$region0: #{encoder_decoder_forward.1}
  #allocation0 [shape = 'u32[]', space=smem, size = 0x4, offset = 0x4, fixed_abs, tag = 'smem constant byte address 0x4 - core index']
  #allocation1 [shape = 'u32[144,128]{1,0:T(1,128)}', space=vmem, size = 0x12000, scoped, tag = 'internal scratch']
  %s0 = inlined_call_operand.vmem [shape: s32[2,8], index: 0, kind: input, shape index: {}]
  %s1 = inlined_call_operand.vmem [shape: s32[2,8], index: 1, kind: input, shape index: {}]
  %s2 = inlined_call_operand.vmem [shape: f32[80,16], index: 2, kind: input, shape index: {}]
  %s3 = inlined_call_operand.hbm [shape: f32[132,96], index: 3, kind: input, shape index: {}]
  %s4 = inlined_call_operand.vmem [shape: f32[33,40], index: 4, kind: input, shape index: {}]
  %s5 = inlined_call_operand.hbm [shape: f32[2,8,40], index: 5, kind: output, shape index: {0}]
  %s6 = inlined_call_operand.hbm [shape: f32[2,32], index: 6, kind: output, shape index: {1}]
  %7 = xla_tuple %s5, %s6
  %s8 = sld [smem:[#allocation0]]
  $region50: #{encoder_decoder_forward.1} parent=0
    _
  %s10 = ssub.s32 1, %s8
  %s11 = scalar_select 0, %s10, %s8
  $region1: #{encoder_decoder_forward.1} parent=0
    #allocation2 [shape = 'u8[1024]{0}', space=smem, size = 0x400, scoped, tag = 'input window, operand 0, single buffered']
    #allocation3 [shape = 's32[1]{0}', space=sflag, size = 0x4, scoped, tag = 'scoped memory for encoder_decoder_forward.1']
    #allocation4 [shape = 's32[1]{0}', space=sflag, size = 0x4, scoped, tag = 'scoped memory for encoder_decoder_forward.1']
    #allocation5 [shape = 's32[1]{0}', space=sflag, size = 0x4, scoped, tag = 'scoped memory for encoder_decoder_forward.1']
    #allocation6 [shape = 'u8[1024]{0}', space=smem, size = 0x400, scoped, tag = 'input window, operand 1, single buffered']
    #allocation7 [shape = 's32[1]{0}', space=sflag, size = 0x4, scoped, tag = 'scoped memory for encoder_decoder_forward.1']
    #allocation8 [shape = 'u8[69632]{0}', space=vmem, size = 0x11000, scoped, tag = 'input window, operand 3, single buffered']
    #allocation9 [shape = 'u8[8192]{0}', space=vmem, size = 0x2000, scoped, tag = 'output window, operand 0, single buffered']
    #allocation10 [shape = 'u8[1024]{0}', space=vmem, size = 0x400, scoped, tag = 'output window, operand 1, single buffered']
    #allocation11 [shape = 's32[1]{0}', space=sflag, size = 0x4, scoped, tag = 'scoped memory for encoder_decoder_forward.1']
    %12 = vsyncpa [#allocation5], 0
    %13 = vsyncpa [#allocation7], 0
    %14 = vsyncpa [#allocation3], 0
    %15 = vsyncpa [#allocation4], 0
    %16 = vsyncpa [#allocation11], 0
    // Predicated region
    $region2: #{encoder_decoder_forward.1} parent=1 // pred_check
      _
    $region3: #{encoder_decoder_forward.1} parent=1 // pred_check_branch
      %18 = sbr.rel (0) target = $region5
    $region4: #{encoder_decoder_forward.1} parent=1 // pred_region
      %s20 = ssub.s32 32, 32
      %21 = vsyncadd [#allocation5], %s20
      %s23 = sshll.u32 %s0, 4
      %s24 = int_to_ptr.vmem [resolvable:$true] %s23
      %26 = dma.vmem_to_smem %s24, 32, [#allocation2], [#allocation5]
    $region5: #{encoder_decoder_forward.1} parent=1 // pred_fallthru
      _
    // Predicated region
    $region6: #{encoder_decoder_forward.1} parent=1 // pred_check
      _
    $region7: #{encoder_decoder_forward.1} parent=1 // pred_check_branch
      %28 = sbr.rel (0) target = $region9
    $region8: #{encoder_decoder_forward.1} parent=1 // pred_region
      %s30 = ssub.s32 32, 32
      %31 = vsyncadd [#allocation7], %s30
      %s33 = sshll.u32 %s1, 4
      %s34 = int_to_ptr.vmem [resolvable:$true] %s33
      %36 = dma.vmem_to_smem %s34, 32, [#allocation6], [#allocation7]
    $region9: #{encoder_decoder_forward.1} parent=1 // pred_fallthru
      _
    // Predicated region
    $region10: #{encoder_decoder_forward.1} parent=1 // pred_check
      _
    $region11: #{encoder_decoder_forward.1} parent=1 // pred_check_branch
      %38 = sbr.rel (0) target = $region13
    $region12: #{encoder_decoder_forward.1} parent=1 // pred_region
      _
    $region13: #{encoder_decoder_forward.1} parent=1 // pred_fallthru
      _
    // Predicated region
    $region14: #{encoder_decoder_forward.1} parent=1 // pred_check
      _
    $region15: #{encoder_decoder_forward.1} parent=1 // pred_check_branch
      %40 = sbr.rel (0) target = $region17
    $region16: #{encoder_decoder_forward.1} parent=1 // pred_region
      %s42 = ssub.s32 2176, 2176
      %43 = vsyncadd [#allocation3], %s42
      %s44 = sshll.u32 [#allocation8], 4
      %s45 = int_to_ptr.vmem [resolvable:$true] %s44
      %50 = dma.hbm_to_vmem [thread:$0]  %s3, 2176, %s45, [#allocation3], 128, 128, 8
    $region17: #{encoder_decoder_forward.1} parent=1 // pred_fallthru
      _
    // Predicated region
    $region18: #{encoder_decoder_forward.1} parent=1 // pred_check
      _
    $region19: #{encoder_decoder_forward.1} parent=1 // pred_check_branch
      %52 = sbr.rel (0) target = $region21
    $region20: #{encoder_decoder_forward.1} parent=1 // pred_region
      _
    $region21: #{encoder_decoder_forward.1} parent=1 // pred_fallthru
      _
    // Predicated region
    $region22: #{encoder_decoder_forward.1} parent=1 // pred_check
      _
    $region23: #{encoder_decoder_forward.1} parent=1 // pred_check_branch
      %54 = sbr.rel (0) target = $region25
    $region24: #{encoder_decoder_forward.1} parent=1 // pred_region
      %55 = dma.done [#allocation5], 32
    $region25: #{encoder_decoder_forward.1} parent=1 // pred_fallthru
      _
    // Predicated region
    $region26: #{encoder_decoder_forward.1} parent=1 // pred_check
      _
    $region27: #{encoder_decoder_forward.1} parent=1 // pred_check_branch
      %57 = sbr.rel (0) target = $region29
    $region28: #{encoder_decoder_forward.1} parent=1 // pred_region
      %58 = dma.done [#allocation7], 32
    $region29: #{encoder_decoder_forward.1} parent=1 // pred_fallthru
      _
    // Predicated region
    $region30: #{encoder_decoder_forward.1} parent=1 // pred_check
      _
    $region31: #{encoder_decoder_forward.1} parent=1 // pred_check_branch
      %60 = sbr.rel (0) target = $region33
    $region32: #{encoder_decoder_forward.1} parent=1 // pred_region
      %61 = dma.done [#allocation3], 2176
    $region33: #{encoder_decoder_forward.1} parent=1 // pred_fallthru
      _
    %62 = sfence
    %v64 = vld [vmem:[#allocation8] sm:$0xff]
    %v65 = vld [vmem:[#allocation8 + $0x8] sm:$0xff]
    %v66 = vld [vmem:[#allocation8 + $0x10] sm:$0xff]
    %v67 = vld [vmem:[#allocation8 + $0x18] sm:$0xff]
    %v68 = vld [vmem:[#allocation8 + $0x20] sm:$0xff]
    %v69 = vld [vmem:[#allocation8 + $0x28] sm:$0xff]
    %v70 = vld [vmem:[#allocation8 + $0x30] sm:$0xff]
    %v71 = vld [vmem:[#allocation8 + $0x38] sm:$0xff]
    %v72 = vld [vmem:[#allocation8 + $0x40] sm:$0xff]
    %v73 = vld [vmem:[#allocation8 + $0x48] sm:$0xff]
    %v74 = vld [vmem:[#allocation8 + $0x50] sm:$0xff]
    %v75 = vld [vmem:[#allocation8 + $0x58] sm:$0xff]
    %v76 = vld [vmem:[#allocation8 + $0x60] sm:$0xff]
    %v77 = vld [vmem:[#allocation8 + $0x68] sm:$0xff]
    %v78 = vld [vmem:[#allocation8 + $0x70] sm:$0xff]
    %v79 = vld [vmem:[#allocation8 + $0x78] sm:$0xff]
    %v80 = vld [vmem:[#allocation8 + $0x80] sm:$0x1]
    %v81 = vld [vmem:[#allocation8 + $0x81] sm:$0x1]
    %v82 = vld [vmem:[#allocation8 + $0x82] sm:$0x1]
    %v83 = vld [vmem:[#allocation8 + $0x83] sm:$0x1]
    %v84 = vld [vmem:[%s4] sm:$0xff]
    %v85 = vld [vmem:[%s4 + $0x8] sm:$0xff]
    %v86 = vld [vmem:[%s4 + $0x10] sm:$0xff]
    %v87 = vld [vmem:[%s4 + $0x18] sm:$0xff]
    %v88 = vld [vmem:[%s4 + $0x20] sm:$0x1]
    %s89 = sld [smem:[#allocation2]]
    %s90 = scalar_lea.vmem %s2, %s89
    %v91 = vld [vmem:[%s90] sm:$0x1]
    %s92 = sld [smem:[#allocation2 + $0x80]]
    %s93 = scalar_lea.vmem %s2, %s92
    %v94 = vld [vmem:[%s93] sm:$0x1]
    %v96 = vrot.slane %v94, 7
    %vm98 = vcmask 1040384
    %v99 = vsel %vm98, %v91, %v96
    %vm100 = vcmask 1041408
    %v101 = vsel %vm100, %v99, 0.0
    %s102 = sld [smem:[#allocation2 + $0x1]]
    %s103 = scalar_lea.vmem %s2, %s102
    %v104 = vld [vmem:[%s103] sm:$0x1]
    %s105 = sld [smem:[#allocation2 + $0x81]]
    %s106 = scalar_lea.vmem %s2, %s105
    %v107 = vld [vmem:[%s106] sm:$0x1]
    %v109 = vrot.slane %v107, 7
    %v111 = vsel %vm98, %v104, %v109
    %v112 = vsel %vm100, %v111, 0.0
    %s113 = sld [smem:[#allocation2 + $0x2]]
    %s114 = scalar_lea.vmem %s2, %s113
    %v115 = vld [vmem:[%s114] sm:$0x1]
    %s116 = sld [smem:[#allocation2 + $0x82]]
    %s117 = scalar_lea.vmem %s2, %s116
    %v118 = vld [vmem:[%s117] sm:$0x1]
    %v120 = vrot.slane %v118, 7
    %v122 = vsel %vm98, %v115, %v120
    %v123 = vsel %vm100, %v122, 0.0
    %s124 = sld [smem:[#allocation2 + $0x3]]
    %s125 = scalar_lea.vmem %s2, %s124
    %v126 = vld [vmem:[%s125] sm:$0x1]
    %s127 = sld [smem:[#allocation2 + $0x83]]
    %s128 = scalar_lea.vmem %s2, %s127
    %v129 = vld [vmem:[%s128] sm:$0x1]
    %v131 = vrot.slane %v129, 7
    %v133 = vsel %vm98, %v126, %v131
    %v134 = vsel %vm100, %v133, 0.0
    %s135 = sld [smem:[#allocation2 + $0x4]]
    %s136 = scalar_lea.vmem %s2, %s135
    %v137 = vld [vmem:[%s136] sm:$0x1]
    %s138 = sld [smem:[#allocation2 + $0x84]]
    %s139 = scalar_lea.vmem %s2, %s138
    %v140 = vld [vmem:[%s139] sm:$0x1]
    %v142 = vrot.slane %v140, 7
    %v144 = vsel %vm98, %v137, %v142
    %v145 = vsel %vm100, %v144, 0.0
    %s146 = sld [smem:[#allocation2 + $0x5]]
    %s147 = scalar_lea.vmem %s2, %s146
    %v148 = vld [vmem:[%s147] sm:$0x1]
    %s149 = sld [smem:[#allocation2 + $0x85]]
    %s150 = scalar_lea.vmem %s2, %s149
    %v151 = vld [vmem:[%s150] sm:$0x1]
    %v153 = vrot.slane %v151, 7
    %v155 = vsel %vm98, %v148, %v153
    %v156 = vsel %vm100, %v155, 0.0
    %s157 = sld [smem:[#allocation2 + $0x6]]
    %s158 = scalar_lea.vmem %s2, %s157
    %v159 = vld [vmem:[%s158] sm:$0x1]
    %s160 = sld [smem:[#allocation2 + $0x86]]
    %s161 = scalar_lea.vmem %s2, %s160
    %v162 = vld [vmem:[%s161] sm:$0x1]
    %v164 = vrot.slane %v162, 7
    %v166 = vsel %vm98, %v159, %v164
    %v167 = vsel %vm100, %v166, 0.0
    %s168 = sld [smem:[#allocation2 + $0x7]]
    %s169 = scalar_lea.vmem %s2, %s168
    %v170 = vld [vmem:[%s169] sm:$0x1]
    %s171 = sld [smem:[#allocation2 + $0x87]]
    %s172 = scalar_lea.vmem %s2, %s171
    %v173 = vld [vmem:[%s172] sm:$0x1]
    %v175 = vrot.slane %v173, 7
    %v177 = vsel %vm98, %v170, %v175
    %v178 = vsel %vm100, %v177, 0.0
    %s179 = sld [smem:[#allocation6]]
    %s180 = sadd.s32 %s179, 40
    %s181 = scalar_lea.vmem %s2, %s180
    %v182 = vld [vmem:[%s181] sm:$0x1]
    %s183 = sld [smem:[#allocation6 + $0x80]]
    %s184 = sadd.s32 %s183, 40
    %s185 = scalar_lea.vmem %s2, %s184
    %v186 = vld [vmem:[%s185] sm:$0x1]
    %v188 = vrot.slane %v186, 7
    %v190 = vsel %vm98, %v182, %v188
    %v191 = vsel %vm100, %v190, 0.0
    %s192 = sld [smem:[#allocation6 + $0x1]]
    %s193 = sadd.s32 %s192, 40
    %s194 = scalar_lea.vmem %s2, %s193
    %v195 = vld [vmem:[%s194] sm:$0x1]
    %s196 = sld [smem:[#allocation6 + $0x81]]
    %s197 = sadd.s32 %s196, 40
    %s198 = scalar_lea.vmem %s2, %s197
    %v199 = vld [vmem:[%s198] sm:$0x1]
    %v201 = vrot.slane %v199, 7
    %v203 = vsel %vm98, %v195, %v201
    %v204 = vsel %vm100, %v203, 0.0
    %s205 = sld [smem:[#allocation6 + $0x2]]
    %s206 = sadd.s32 %s205, 40
    %s207 = scalar_lea.vmem %s2, %s206
    %v208 = vld [vmem:[%s207] sm:$0x1]
    %s209 = sld [smem:[#allocation6 + $0x82]]
    %s210 = sadd.s32 %s209, 40
    %s211 = scalar_lea.vmem %s2, %s210
    %v212 = vld [vmem:[%s211] sm:$0x1]
    %v214 = vrot.slane %v212, 7
    %v216 = vsel %vm98, %v208, %v214
    %v217 = vsel %vm100, %v216, 0.0
    %s218 = sld [smem:[#allocation6 + $0x3]]
    %s219 = sadd.s32 %s218, 40
    %s220 = scalar_lea.vmem %s2, %s219
    %v221 = vld [vmem:[%s220] sm:$0x1]
    %s222 = sld [smem:[#allocation6 + $0x83]]
    %s223 = sadd.s32 %s222, 40
    %s224 = scalar_lea.vmem %s2, %s223
    %v225 = vld [vmem:[%s224] sm:$0x1]
    %v227 = vrot.slane %v225, 7
    %v229 = vsel %vm98, %v221, %v227
    %v230 = vsel %vm100, %v229, 0.0
    %s231 = sld [smem:[#allocation6 + $0x4]]
    %s232 = sadd.s32 %s231, 40
    %s233 = scalar_lea.vmem %s2, %s232
    %v234 = vld [vmem:[%s233] sm:$0x1]
    %s235 = sld [smem:[#allocation6 + $0x84]]
    %s236 = sadd.s32 %s235, 40
    %s237 = scalar_lea.vmem %s2, %s236
    %v238 = vld [vmem:[%s237] sm:$0x1]
    %v240 = vrot.slane %v238, 7
    %v242 = vsel %vm98, %v234, %v240
    %v243 = vsel %vm100, %v242, 0.0
    %s244 = sld [smem:[#allocation6 + $0x5]]
    %s245 = sadd.s32 %s244, 40
    %s246 = scalar_lea.vmem %s2, %s245
    %v247 = vld [vmem:[%s246] sm:$0x1]
    %s248 = sld [smem:[#allocation6 + $0x85]]
    %s249 = sadd.s32 %s248, 40
    %s250 = scalar_lea.vmem %s2, %s249
    %v251 = vld [vmem:[%s250] sm:$0x1]
    %v253 = vrot.slane %v251, 7
    %v255 = vsel %vm98, %v247, %v253
    %v256 = vsel %vm100, %v255, 0.0
    %s257 = sld [smem:[#allocation6 + $0x6]]
    %s258 = sadd.s32 %s257, 40
    %s259 = scalar_lea.vmem %s2, %s258
    %v260 = vld [vmem:[%s259] sm:$0x1]
    %s261 = sld [smem:[#allocation6 + $0x86]]
    %s262 = sadd.s32 %s261, 40
    %s263 = scalar_lea.vmem %s2, %s262
    %v264 = vld [vmem:[%s263] sm:$0x1]
    %v266 = vrot.slane %v264, 7
    %v268 = vsel %vm98, %v260, %v266
    %v269 = vsel %vm100, %v268, 0.0
    %s270 = sld [smem:[#allocation6 + $0x7]]
    %s271 = sadd.s32 %s270, 40
    %s272 = scalar_lea.vmem %s2, %s271
    %v273 = vld [vmem:[%s272] sm:$0x1]
    %s274 = sld [smem:[#allocation6 + $0x87]]
    %s275 = sadd.s32 %s274, 40
    %s276 = scalar_lea.vmem %s2, %s275
    %v277 = vld [vmem:[%s276] sm:$0x1]
    %v279 = vrot.slane %v277, 7
    %v281 = vsel %vm98, %v273, %v279
    %v282 = vsel %vm100, %v281, 0.0
    %v283 = vpack.c.bf16 %v112, %v101
    %v284 = vpack.c.bf16 %v134, %v123
    %v285 = vpack.c.bf16 %v156, %v145
    %v286 = vpack.c.bf16 %v178, %v167
    %v287 = vpack.c.bf16 %v65, %v64
    %v288 = vlaneseq
    %v289 = vshrl.u32 %v288, 7
    %v290 = vsub.s32 0, %v289
    %v291 = vrot.slane %v80, %v290
    %vm292 = vcmask 130048
    %v294 = vsel %vm292, %v283, 0
    %v297 = vsel %vm292, %v284, 0
    %v300 = vsel %vm292, %v285, 0
    %v303 = vsel %vm292, %v286, 0
    %305 = vmatprep.subr.bf16.mxu0 0
    %306 = vmatpush1.bf16.msra.mxu0 0
    %307 = vmatprep.subr.bf16.mxu0 0
    %308 = vmatpush1.bf16.msra.mxu0 0
    %309 = vmatprep.subr.bf16.mxu0 0
    %310 = vmatpush1.bf16.msra.mxu0 0
    %311 = vmatprep.subr.bf16.mxu0 0
    %312 = vmatpush1.bf16.msra.mxu0 0
    %313 = vmatprep.subr.bf16.mxu0 0
    %314 = vmatpush1.bf16.msra.mxu0 0
    %315 = vmatprep.subr.bf16.mxu0 0
    %316 = vmatpush1.bf16.msra.mxu0 0
    %317 = vmatprep.subr.bf16.mxu0 0
    %318 = vmatpush1.bf16.msra.mxu0 0
    %319 = vmatprep.subr.bf16.mxu0 0
    %320 = vmatpush1.bf16.msra.mxu0 %v287
    %321 = vmatprep.subr.bf16.mxu0 0
    %322 = vmatpush2.bf16.msra.mxu0 0
    %323 = vmatprep.subr.bf16.mxu0 0
    %324 = vmatpush2.bf16.msra.mxu0 0
    %325 = vmatprep.subr.bf16.mxu0 0
    %326 = vmatpush2.bf16.msra.mxu0 0
    %327 = vmatprep.subr.bf16.mxu0 0
    %328 = vmatpush2.bf16.msra.mxu0 0
    %329 = vmatprep.subr.bf16.mxu0 0
    %330 = vmatpush2.bf16.msra.mxu0 0
    %331 = vmatprep.subr.bf16.mxu0 0
    %332 = vmatpush2.bf16.msra.mxu0 0
    %333 = vmatprep.subr.bf16.mxu0 0
    %334 = vmatpush2.bf16.msra.mxu0 0
    %335 = vmatprep.subr.bf16.mxu0 0
    %336 = vmatpush2.bf16.msra.mxu0 0
    %337 = vmatprep.mubr.bf16.mxu0 0
    %338 = vmatmul.mubr.bf16.gmra.mxu0 %v294
    %v339 = vpop.f32.mrf.mxu0
    %v340 = vadd.f32 %v291, %v339
    %v341 = vpop.f32.mrf.mxu0
    %v342 = vpop.f32.mrf.mxu0
    %v343 = vadd.f32 %v291, %v342
    %v344 = vpop.f32.mrf.mxu0
    %345 = vmatprep.mubr.bf16.mxu0 0
    %346 = vmatmul.mubr.bf16.gmra.mxu0 %v297
    %v347 = vpop.f32.mrf.mxu0
    %v348 = vadd.f32 %v291, %v347
    %v349 = vpop.f32.mrf.mxu0
    %v350 = vpop.f32.mrf.mxu0
    %v351 = vadd.f32 %v291, %v350
    %v352 = vpop.f32.mrf.mxu0
    %353 = vmatprep.mubr.bf16.mxu0 0
    %354 = vmatmul.mubr.bf16.gmra.mxu0 %v300
    %v355 = vpop.f32.mrf.mxu0
    %v356 = vadd.f32 %v291, %v355
    %v357 = vpop.f32.mrf.mxu0
    %v358 = vpop.f32.mrf.mxu0
    %v359 = vadd.f32 %v291, %v358
    %v360 = vpop.f32.mrf.mxu0
    %361 = vmatprep.mubr.bf16.mxu0 0
    %362 = vmatmul.mubr.bf16.gmra.mxu0 %v303
    %v363 = vpop.f32.mrf.mxu0
    %v364 = vadd.f32 %v291, %v363
    %v365 = vpop.f32.mrf.mxu0
    %v366 = vpop.f32.mrf.mxu0
    %v367 = vadd.f32 %v291, %v366
    %v368 = vpop.f32.mrf.mxu0
    %369 = vdwg.mxu0
    %v370 = vpack.c.bf16 %v67, %v66
    %v371 = vpack.c.bf16 %v69, %v68
    %v372 = vlaneseq
    %v373 = vshrl.u32 %v372, 7
    %v374 = vsub.s32 0, %v373
    %v375 = vrot.slane %v81, %v374
    %vm376 = vcmask 261120
    %v378 = vsel %vm376, 0, 0
    %380 = vmatprep.subr.bf16.mxu0 0
    %381 = vmatpush1.bf16.msra.mxu0 0
    %382 = vmatprep.subr.bf16.mxu0 0
    %383 = vmatpush1.bf16.msra.mxu0 0
    %384 = vmatprep.subr.bf16.mxu0 0
    %385 = vmatpush1.bf16.msra.mxu0 0
    %386 = vmatprep.subr.bf16.mxu0 0
    %387 = vmatpush1.bf16.msra.mxu0 0
    %388 = vmatprep.subr.bf16.mxu0 0
    %389 = vmatpush1.bf16.msra.mxu0 0
    %390 = vmatprep.subr.bf16.mxu0 0
    %391 = vmatpush1.bf16.msra.mxu0 0
    %392 = vmatprep.subr.bf16.mxu0 0
    %393 = vmatpush1.bf16.msra.mxu0 %v371
    %394 = vmatprep.subr.bf16.mxu0 0
    %395 = vmatpush1.bf16.msra.mxu0 %v370
    %396 = vmatprep.subr.bf16.mxu0 0
    %397 = vmatpush2.bf16.msra.mxu0 0
    %398 = vmatprep.subr.bf16.mxu0 0
    %399 = vmatpush2.bf16.msra.mxu0 0
    %400 = vmatprep.subr.bf16.mxu0 0
    %401 = vmatpush2.bf16.msra.mxu0 0
    %402 = vmatprep.subr.bf16.mxu0 0
    %403 = vmatpush2.bf16.msra.mxu0 0
    %404 = vmatprep.subr.bf16.mxu0 0
    %405 = vmatpush2.bf16.msra.mxu0 0
    %406 = vmatprep.subr.bf16.mxu0 0
    %407 = vmatpush2.bf16.msra.mxu0 0
    %408 = vmatprep.subr.bf16.mxu0 0
    %409 = vmatpush2.bf16.msra.mxu0 0
    %410 = vmatprep.subr.bf16.mxu0 0
    %411 = vmatpush2.bf16.msra.mxu0 0
    %412 = vmatprep.mubr.bf16.mxu0 0
    %413 = vmatmul.mubr.bf16.gmra.mxu0 %v378
    %v414 = vpop.f32.mrf.mxu0
    %v415 = vadd.f32 %v375, %v414
    %v416 = vpop.f32.mrf.mxu0
    %v417 = vpop.f32.mrf.mxu0
    %v418 = vpop.f32.mrf.mxu0
    %419 = vdwg.mxu0
    %v420 = vadd.f32 %v340, %v415
    %v421 = vxor.u32 %v420, 2147483648
    %v422 = vmul.f32 %v421, 1.442695
    %v423 = vpow.pop %v422
    %v424 = vadd.f32 %v423, 1.0
    %v425 = vrcp.pop %v424
    %v426 = vmul.f32 1.0, %v425
    %428 = vrot.lane.b32.xlu0 %v415, 64
    %v429 = vpop.permute.xlu0 %428
    %v431 = vmul.f32 %v426, %v429
    %433 = vrot.lane.b32.xlu0 %v431, 64
    %v434 = vpop.permute.xlu0 %433
    %v436 = vadd.f32 %v340, %v434
    %v437 = vtanh.pop %v436
    %v438 = vsub.f32 0.0, %v437
    %440 = vrot.lane.b32.xlu0 %v438, 96
    %v441 = vpop.permute.xlu0 %440
    %v443 = vmul.f32 %v426, %v441
    %445 = vrot.lane.b32.xlu0 %v443, 32
    %v446 = vpop.permute.xlu0 %445
    %v448 = vadd.f32 %v437, %v446
    %v449 = vpack.c.bf16 %v448, %v448
    %451 = vrot.lane.b32.xlu0 %v449, 64
    %v452 = vpop.permute.xlu0 %451
    %v454 = vsel %vm376, %v452, 0
    %456 = vmatprep.subr.bf16.mxu0 0
    %457 = vmatpush1.bf16.msra.mxu0 0
    %458 = vmatprep.subr.bf16.mxu0 0
    %459 = vmatpush1.bf16.msra.mxu0 0
    %460 = vmatprep.subr.bf16.mxu0 0
    %461 = vmatpush1.bf16.msra.mxu0 0
    %462 = vmatprep.subr.bf16.mxu0 0
    %463 = vmatpush1.bf16.msra.mxu0 0
    %464 = vmatprep.subr.bf16.mxu0 0
    %465 = vmatpush1.bf16.msra.mxu0 0
    %466 = vmatprep.subr.bf16.mxu0 0
    %467 = vmatpush1.bf16.msra.mxu0 0
    %468 = vmatprep.subr.bf16.mxu0 0
    %469 = vmatpush1.bf16.msra.mxu0 %v371
    %470 = vmatprep.subr.bf16.mxu0 0
    %471 = vmatpush1.bf16.msra.mxu0 %v370
    %472 = vmatprep.subr.bf16.mxu0 0
    %473 = vmatpush2.bf16.msra.mxu0 0
    %474 = vmatprep.subr.bf16.mxu0 0
    %475 = vmatpush2.bf16.msra.mxu0 0
    %476 = vmatprep.subr.bf16.mxu0 0
    %477 = vmatpush2.bf16.msra.mxu0 0
    %478 = vmatprep.subr.bf16.mxu0 0
    %479 = vmatpush2.bf16.msra.mxu0 0
    %480 = vmatprep.subr.bf16.mxu0 0
    %481 = vmatpush2.bf16.msra.mxu0 0
    %482 = vmatprep.subr.bf16.mxu0 0
    %483 = vmatpush2.bf16.msra.mxu0 0
    %484 = vmatprep.subr.bf16.mxu0 0
    %485 = vmatpush2.bf16.msra.mxu0 0
    %486 = vmatprep.subr.bf16.mxu0 0
    %487 = vmatpush2.bf16.msra.mxu0 0
    %488 = vmatprep.mubr.bf16.mxu0 0
    %489 = vmatmul.mubr.bf16.gmra.mxu0 %v454
    %v490 = vpop.f32.mrf.mxu0
    %v491 = vadd.f32 %v375, %v490
    %v492 = vpop.f32.mrf.mxu0
    %v493 = vpop.f32.mrf.mxu0
    %v494 = vpop.f32.mrf.mxu0
    %495 = vdwg.mxu0
    %v496 = vadd.f32 %v343, %v491
    %v497 = vxor.u32 %v496, 2147483648
    %v498 = vmul.f32 %v497, 1.442695
    %v499 = vpow.pop %v498
    %v500 = vadd.f32 %v499, 1.0
    %v501 = vrcp.pop %v500
    %v502 = vmul.f32 1.0, %v501
    %504 = vrot.lane.b32.xlu0 %v491, 64
    %v505 = vpop.permute.xlu0 %504
    %v507 = vmul.f32 %v502, %v505
    %509 = vrot.lane.b32.xlu0 %v507, 64
    %v510 = vpop.permute.xlu0 %509
    %v512 = vadd.f32 %v343, %v510
    %v513 = vtanh.pop %v512
    %v514 = vsub.f32 %v448, %v513
    %516 = vrot.lane.b32.xlu0 %v514, 96
    %v517 = vpop.permute.xlu0 %516
    %v519 = vmul.f32 %v502, %v517
    %521 = vrot.lane.b32.xlu0 %v519, 32
    %v522 = vpop.permute.xlu0 %521
    %v524 = vadd.f32 %v513, %v522
    %v525 = vpack.c.bf16 %v524, %v524
    %527 = vrot.lane.b32.xlu0 %v525, 64
    %v528 = vpop.permute.xlu0 %527
    %v530 = vsel %vm376, %v528, 0
    %532 = vmatprep.subr.bf16.mxu0 0
    %533 = vmatpush1.bf16.msra.mxu0 0
    %534 = vmatprep.subr.bf16.mxu0 0
    %535 = vmatpush1.bf16.msra.mxu0 0
    %536 = vmatprep.subr.bf16.mxu0 0
    %537 = vmatpush1.bf16.msra.mxu0 0
    %538 = vmatprep.subr.bf16.mxu0 0
    %539 = vmatpush1.bf16.msra.mxu0 0
    %540 = vmatprep.subr.bf16.mxu0 0
    %541 = vmatpush1.bf16.msra.mxu0 0
    %542 = vmatprep.subr.bf16.mxu0 0
    %543 = vmatpush1.bf16.msra.mxu0 0
    %544 = vmatprep.subr.bf16.mxu0 0
    %545 = vmatpush1.bf16.msra.mxu0 %v371
    %546 = vmatprep.subr.bf16.mxu0 0
    %547 = vmatpush1.bf16.msra.mxu0 %v370
    %548 = vmatprep.subr.bf16.mxu0 0
    %549 = vmatpush2.bf16.msra.mxu0 0
    %550 = vmatprep.subr.bf16.mxu0 0
    %551 = vmatpush2.bf16.msra.mxu0 0
    %552 = vmatprep.subr.bf16.mxu0 0
    %553 = vmatpush2.bf16.msra.mxu0 0
    %554 = vmatprep.subr.bf16.mxu0 0
    %555 = vmatpush2.bf16.msra.mxu0 0
    %556 = vmatprep.subr.bf16.mxu0 0
    %557 = vmatpush2.bf16.msra.mxu0 0
    %558 = vmatprep.subr.bf16.mxu0 0
    %559 = vmatpush2.bf16.msra.mxu0 0
    %560 = vmatprep.subr.bf16.mxu0 0
    %561 = vmatpush2.bf16.msra.mxu0 0
    %562 = vmatprep.subr.bf16.mxu0 0
    %563 = vmatpush2.bf16.msra.mxu0 0
    %564 = vmatprep.mubr.bf16.mxu0 0
    %565 = vmatmul.mubr.bf16.gmra.mxu0 %v530
    %v566 = vpop.f32.mrf.mxu0
    %v567 = vadd.f32 %v375, %v566
    %v568 = vpop.f32.mrf.mxu0
    %v569 = vpop.f32.mrf.mxu0
    %v570 = vpop.f32.mrf.mxu0
    %571 = vdwg.mxu0
    %v572 = vadd.f32 %v348, %v567
    %v573 = vxor.u32 %v572, 2147483648
    %v574 = vmul.f32 %v573, 1.442695
    %v575 = vpow.pop %v574
    %v576 = vadd.f32 %v575, 1.0
    %v577 = vrcp.pop %v576
    %v578 = vmul.f32 1.0, %v577
    %580 = vrot.lane.b32.xlu0 %v567, 64
    %v581 = vpop.permute.xlu0 %580
    %v583 = vmul.f32 %v578, %v581
    %585 = vrot.lane.b32.xlu0 %v583, 64
    %v586 = vpop.permute.xlu0 %585
    %v588 = vadd.f32 %v348, %v586
    %v589 = vtanh.pop %v588
    %v590 = vsub.f32 %v524, %v589
    %592 = vrot.lane.b32.xlu0 %v590, 96
    %v593 = vpop.permute.xlu0 %592
    %v595 = vmul.f32 %v578, %v593
    %597 = vrot.lane.b32.xlu0 %v595, 32
    %v598 = vpop.permute.xlu0 %597
    %v600 = vadd.f32 %v589, %v598
    %v601 = vpack.c.bf16 %v600, %v600
    %603 = vrot.lane.b32.xlu0 %v601, 64
    %v604 = vpop.permute.xlu0 %603
    %v606 = vsel %vm376, %v604, 0
    %608 = vmatprep.subr.bf16.mxu0 0
    %609 = vmatpush1.bf16.msra.mxu0 0
    %610 = vmatprep.subr.bf16.mxu0 0
    %611 = vmatpush1.bf16.msra.mxu0 0
    %612 = vmatprep.subr.bf16.mxu0 0
    %613 = vmatpush1.bf16.msra.mxu0 0
    %614 = vmatprep.subr.bf16.mxu0 0
    %615 = vmatpush1.bf16.msra.mxu0 0
    %616 = vmatprep.subr.bf16.mxu0 0
    %617 = vmatpush1.bf16.msra.mxu0 0
    %618 = vmatprep.subr.bf16.mxu0 0
    %619 = vmatpush1.bf16.msra.mxu0 0
    %620 = vmatprep.subr.bf16.mxu0 0
    %621 = vmatpush1.bf16.msra.mxu0 %v371
    %622 = vmatprep.subr.bf16.mxu0 0
    %623 = vmatpush1.bf16.msra.mxu0 %v370
    %624 = vmatprep.subr.bf16.mxu0 0
    %625 = vmatpush2.bf16.msra.mxu0 0
    %626 = vmatprep.subr.bf16.mxu0 0
    %627 = vmatpush2.bf16.msra.mxu0 0
    %628 = vmatprep.subr.bf16.mxu0 0
    %629 = vmatpush2.bf16.msra.mxu0 0
    %630 = vmatprep.subr.bf16.mxu0 0
    %631 = vmatpush2.bf16.msra.mxu0 0
    %632 = vmatprep.subr.bf16.mxu0 0
    %633 = vmatpush2.bf16.msra.mxu0 0
    %634 = vmatprep.subr.bf16.mxu0 0
    %635 = vmatpush2.bf16.msra.mxu0 0
    %636 = vmatprep.subr.bf16.mxu0 0
    %637 = vmatpush2.bf16.msra.mxu0 0
    %638 = vmatprep.subr.bf16.mxu0 0
    %639 = vmatpush2.bf16.msra.mxu0 0
    %640 = vmatprep.mubr.bf16.mxu0 0
    %641 = vmatmul.mubr.bf16.gmra.mxu0 %v606
    %v642 = vpop.f32.mrf.mxu0
    %v643 = vadd.f32 %v375, %v642
    %v644 = vpop.f32.mrf.mxu0
    %v645 = vpop.f32.mrf.mxu0
    %v646 = vpop.f32.mrf.mxu0
    %647 = vdwg.mxu0
    %v648 = vadd.f32 %v351, %v643
    %v649 = vxor.u32 %v648, 2147483648
    %v650 = vmul.f32 %v649, 1.442695
    %v651 = vpow.pop %v650
    %v652 = vadd.f32 %v651, 1.0
    %v653 = vrcp.pop %v652
    %v654 = vmul.f32 1.0, %v653
    %656 = vrot.lane.b32.xlu0 %v643, 64
    %v657 = vpop.permute.xlu0 %656
    %v659 = vmul.f32 %v654, %v657
    %661 = vrot.lane.b32.xlu0 %v659, 64
    %v662 = vpop.permute.xlu0 %661
    %v664 = vadd.f32 %v351, %v662
    %v665 = vtanh.pop %v664
    %v666 = vsub.f32 %v600, %v665
    %668 = vrot.lane.b32.xlu0 %v666, 96
    %v669 = vpop.permute.xlu0 %668
    %v671 = vmul.f32 %v654, %v669
    %673 = vrot.lane.b32.xlu0 %v671, 32
    %v674 = vpop.permute.xlu0 %673
    %v676 = vadd.f32 %v665, %v674
    %v677 = vpack.c.bf16 %v676, %v676
    %679 = vrot.lane.b32.xlu0 %v677, 64
    %v680 = vpop.permute.xlu0 %679
    %v682 = vsel %vm376, %v680, 0
    %684 = vmatprep.subr.bf16.mxu0 0
    %685 = vmatpush1.bf16.msra.mxu0 0
    %686 = vmatprep.subr.bf16.mxu0 0
    %687 = vmatpush1.bf16.msra.mxu0 0
    %688 = vmatprep.subr.bf16.mxu0 0
    %689 = vmatpush1.bf16.msra.mxu0 0
    %690 = vmatprep.subr.bf16.mxu0 0
    %691 = vmatpush1.bf16.msra.mxu0 0
    %692 = vmatprep.subr.bf16.mxu0 0
    %693 = vmatpush1.bf16.msra.mxu0 0
    %694 = vmatprep.subr.bf16.mxu0 0
    %695 = vmatpush1.bf16.msra.mxu0 0
    %696 = vmatprep.subr.bf16.mxu0 0
    %697 = vmatpush1.bf16.msra.mxu0 %v371
    %698 = vmatprep.subr.bf16.mxu0 0
    %699 = vmatpush1.bf16.msra.mxu0 %v370
    %700 = vmatprep.subr.bf16.mxu0 0
    %701 = vmatpush2.bf16.msra.mxu0 0
    %702 = vmatprep.subr.bf16.mxu0 0
    %703 = vmatpush2.bf16.msra.mxu0 0
    %704 = vmatprep.subr.bf16.mxu0 0
    %705 = vmatpush2.bf16.msra.mxu0 0
    %706 = vmatprep.subr.bf16.mxu0 0
    %707 = vmatpush2.bf16.msra.mxu0 0
    %708 = vmatprep.subr.bf16.mxu0 0
    %709 = vmatpush2.bf16.msra.mxu0 0
    %710 = vmatprep.subr.bf16.mxu0 0
    %711 = vmatpush2.bf16.msra.mxu0 0
    %712 = vmatprep.subr.bf16.mxu0 0
    %713 = vmatpush2.bf16.msra.mxu0 0
    %714 = vmatprep.subr.bf16.mxu0 0
    %715 = vmatpush2.bf16.msra.mxu0 0
    %716 = vmatprep.mubr.bf16.mxu0 0
    %717 = vmatmul.mubr.bf16.gmra.mxu0 %v682
    %v718 = vpop.f32.mrf.mxu0
    %v719 = vadd.f32 %v375, %v718
    %v720 = vpop.f32.mrf.mxu0
    %v721 = vpop.f32.mrf.mxu0
    %v722 = vpop.f32.mrf.mxu0
    %723 = vdwg.mxu0
    %v724 = vadd.f32 %v356, %v719
    %v725 = vxor.u32 %v724, 2147483648
    %v726 = vmul.f32 %v725, 1.442695
    %v727 = vpow.pop %v726
    %v728 = vadd.f32 %v727, 1.0
    %v729 = vrcp.pop %v728
    %v730 = vmul.f32 1.0, %v729
    %732 = vrot.lane.b32.xlu0 %v719, 64
    %v733 = vpop.permute.xlu0 %732
    %v735 = vmul.f32 %v730, %v733
    %737 = vrot.lane.b32.xlu0 %v735, 64
    %v738 = vpop.permute.xlu0 %737
    %v740 = vadd.f32 %v356, %v738
    %v741 = vtanh.pop %v740
    %v742 = vsub.f32 %v676, %v741
    %744 = vrot.lane.b32.xlu0 %v742, 96
    %v745 = vpop.permute.xlu0 %744
    %v747 = vmul.f32 %v730, %v745
    %749 = vrot.lane.b32.xlu0 %v747, 32
    %v750 = vpop.permute.xlu0 %749
    %v752 = vadd.f32 %v741, %v750
    %v753 = vpack.c.bf16 %v752, %v752
    %755 = vrot.lane.b32.xlu0 %v753, 64
    %v756 = vpop.permute.xlu0 %755
    %v758 = vsel %vm376, %v756, 0
    %760 = vmatprep.subr.bf16.mxu0 0
    %761 = vmatpush1.bf16.msra.mxu0 0
    %762 = vmatprep.subr.bf16.mxu0 0
    %763 = vmatpush1.bf16.msra.mxu0 0
    %764 = vmatprep.subr.bf16.mxu0 0
    %765 = vmatpush1.bf16.msra.mxu0 0
    %766 = vmatprep.subr.bf16.mxu0 0
    %767 = vmatpush1.bf16.msra.mxu0 0
    %768 = vmatprep.subr.bf16.mxu0 0
    %769 = vmatpush1.bf16.msra.mxu0 0
    %770 = vmatprep.subr.bf16.mxu0 0
    %771 = vmatpush1.bf16.msra.mxu0 0
    %772 = vmatprep.subr.bf16.mxu0 0
    %773 = vmatpush1.bf16.msra.mxu0 %v371
    %774 = vmatprep.subr.bf16.mxu0 0
    %775 = vmatpush1.bf16.msra.mxu0 %v370
    %776 = vmatprep.subr.bf16.mxu0 0
    %777 = vmatpush2.bf16.msra.mxu0 0
    %778 = vmatprep.subr.bf16.mxu0 0
    %779 = vmatpush2.bf16.msra.mxu0 0
    %780 = vmatprep.subr.bf16.mxu0 0
    %781 = vmatpush2.bf16.msra.mxu0 0
    %782 = vmatprep.subr.bf16.mxu0 0
    %783 = vmatpush2.bf16.msra.mxu0 0
    %784 = vmatprep.subr.bf16.mxu0 0
    %785 = vmatpush2.bf16.msra.mxu0 0
    %786 = vmatprep.subr.bf16.mxu0 0
    %787 = vmatpush2.bf16.msra.mxu0 0
    %788 = vmatprep.subr.bf16.mxu0 0
    %789 = vmatpush2.bf16.msra.mxu0 0
    %790 = vmatprep.subr.bf16.mxu0 0
    %791 = vmatpush2.bf16.msra.mxu0 0
    %792 = vmatprep.mubr.bf16.mxu0 0
    %793 = vmatmul.mubr.bf16.gmra.mxu0 %v758
    %v794 = vpop.f32.mrf.mxu0
    %v795 = vadd.f32 %v375, %v794
    %v796 = vpop.f32.mrf.mxu0
    %v797 = vpop.f32.mrf.mxu0
    %v798 = vpop.f32.mrf.mxu0
    %799 = vdwg.mxu0
    %v800 = vadd.f32 %v359, %v795
    %v801 = vxor.u32 %v800, 2147483648
    %v802 = vmul.f32 %v801, 1.442695
    %v803 = vpow.pop %v802
    %v804 = vadd.f32 %v803, 1.0
    %v805 = vrcp.pop %v804
    %v806 = vmul.f32 1.0, %v805
    %808 = vrot.lane.b32.xlu0 %v795, 64
    %v809 = vpop.permute.xlu0 %808
    %v811 = vmul.f32 %v806, %v809
    %813 = vrot.lane.b32.xlu0 %v811, 64
    %v814 = vpop.permute.xlu0 %813
    %v816 = vadd.f32 %v359, %v814
    %v817 = vtanh.pop %v816
    %v818 = vsub.f32 %v752, %v817
    %820 = vrot.lane.b32.xlu0 %v818, 96
    %v821 = vpop.permute.xlu0 %820
    %v823 = vmul.f32 %v806, %v821
    %825 = vrot.lane.b32.xlu0 %v823, 32
    %v826 = vpop.permute.xlu0 %825
    %v828 = vadd.f32 %v817, %v826
    %v829 = vpack.c.bf16 %v828, %v828
    %831 = vrot.lane.b32.xlu0 %v829, 64
    %v832 = vpop.permute.xlu0 %831
    %v834 = vsel %vm376, %v832, 0
    %836 = vmatprep.subr.bf16.mxu0 0
    %837 = vmatpush1.bf16.msra.mxu0 0
    %838 = vmatprep.subr.bf16.mxu0 0
    %839 = vmatpush1.bf16.msra.mxu0 0
    %840 = vmatprep.subr.bf16.mxu0 0
    %841 = vmatpush1.bf16.msra.mxu0 0
    %842 = vmatprep.subr.bf16.mxu0 0
    %843 = vmatpush1.bf16.msra.mxu0 0
    %844 = vmatprep.subr.bf16.mxu0 0
    %845 = vmatpush1.bf16.msra.mxu0 0
    %846 = vmatprep.subr.bf16.mxu0 0
    %847 = vmatpush1.bf16.msra.mxu0 0
    %848 = vmatprep.subr.bf16.mxu0 0
    %849 = vmatpush1.bf16.msra.mxu0 %v371
    %850 = vmatprep.subr.bf16.mxu0 0
    %851 = vmatpush1.bf16.msra.mxu0 %v370
    %852 = vmatprep.subr.bf16.mxu0 0
    %853 = vmatpush2.bf16.msra.mxu0 0
    %854 = vmatprep.subr.bf16.mxu0 0
    %855 = vmatpush2.bf16.msra.mxu0 0
    %856 = vmatprep.subr.bf16.mxu0 0
    %857 = vmatpush2.bf16.msra.mxu0 0
    %858 = vmatprep.subr.bf16.mxu0 0
    %859 = vmatpush2.bf16.msra.mxu0 0
    %860 = vmatprep.subr.bf16.mxu0 0
    %861 = vmatpush2.bf16.msra.mxu0 0
    %862 = vmatprep.subr.bf16.mxu0 0
    %863 = vmatpush2.bf16.msra.mxu0 0
    %864 = vmatprep.subr.bf16.mxu0 0
    %865 = vmatpush2.bf16.msra.mxu0 0
    %866 = vmatprep.subr.bf16.mxu0 0
    %867 = vmatpush2.bf16.msra.mxu0 0
    %868 = vmatprep.mubr.bf16.mxu0 0
    %869 = vmatmul.mubr.bf16.gmra.mxu0 %v834
    %v870 = vpop.f32.mrf.mxu0
    %v871 = vadd.f32 %v375, %v870
    %v872 = vpop.f32.mrf.mxu0
    %v873 = vpop.f32.mrf.mxu0
    %v874 = vpop.f32.mrf.mxu0
    %875 = vdwg.mxu0
    %v876 = vadd.f32 %v364, %v871
    %v877 = vxor.u32 %v876, 2147483648
    %v878 = vmul.f32 %v877, 1.442695
    %v879 = vpow.pop %v878
    %v880 = vadd.f32 %v879, 1.0
    %v881 = vrcp.pop %v880
    %v882 = vmul.f32 1.0, %v881
    %884 = vrot.lane.b32.xlu0 %v871, 64
    %v885 = vpop.permute.xlu0 %884
    %v887 = vmul.f32 %v882, %v885
    %889 = vrot.lane.b32.xlu0 %v887, 64
    %v890 = vpop.permute.xlu0 %889
    %v892 = vadd.f32 %v364, %v890
    %v893 = vtanh.pop %v892
    %v894 = vsub.f32 %v828, %v893
    %896 = vrot.lane.b32.xlu0 %v894, 96
    %v897 = vpop.permute.xlu0 %896
    %v899 = vmul.f32 %v882, %v897
    %901 = vrot.lane.b32.xlu0 %v899, 32
    %v902 = vpop.permute.xlu0 %901
    %v904 = vadd.f32 %v893, %v902
    %v905 = vpack.c.bf16 %v904, %v904
    %907 = vrot.lane.b32.xlu0 %v905, 64
    %v908 = vpop.permute.xlu0 %907
    %v910 = vsel %vm376, %v908, 0
    %912 = vmatprep.subr.bf16.mxu0 0
    %913 = vmatpush1.bf16.msra.mxu0 0
    %914 = vmatprep.subr.bf16.mxu0 0
    %915 = vmatpush1.bf16.msra.mxu0 0
    %916 = vmatprep.subr.bf16.mxu0 0
    %917 = vmatpush1.bf16.msra.mxu0 0
    %918 = vmatprep.subr.bf16.mxu0 0
    %919 = vmatpush1.bf16.msra.mxu0 0
    %920 = vmatprep.subr.bf16.mxu0 0
    %921 = vmatpush1.bf16.msra.mxu0 0
    %922 = vmatprep.subr.bf16.mxu0 0
    %923 = vmatpush1.bf16.msra.mxu0 0
    %924 = vmatprep.subr.bf16.mxu0 0
    %925 = vmatpush1.bf16.msra.mxu0 %v371
    %926 = vmatprep.subr.bf16.mxu0 0
    %927 = vmatpush1.bf16.msra.mxu0 %v370
    %928 = vmatprep.subr.bf16.mxu0 0
    %929 = vmatpush2.bf16.msra.mxu0 0
    %930 = vmatprep.subr.bf16.mxu0 0
    %931 = vmatpush2.bf16.msra.mxu0 0
    %932 = vmatprep.subr.bf16.mxu0 0
    %933 = vmatpush2.bf16.msra.mxu0 0
    %934 = vmatprep.subr.bf16.mxu0 0
    %935 = vmatpush2.bf16.msra.mxu0 0
    %936 = vmatprep.subr.bf16.mxu0 0
    %937 = vmatpush2.bf16.msra.mxu0 0
    %938 = vmatprep.subr.bf16.mxu0 0
    %939 = vmatpush2.bf16.msra.mxu0 0
    %940 = vmatprep.subr.bf16.mxu0 0
    %941 = vmatpush2.bf16.msra.mxu0 0
    %942 = vmatprep.subr.bf16.mxu0 0
    %943 = vmatpush2.bf16.msra.mxu0 0
    %944 = vmatprep.mubr.bf16.mxu0 0
    %945 = vmatmul.mubr.bf16.gmra.mxu0 %v910
    %v946 = vpop.f32.mrf.mxu0
    %v947 = vadd.f32 %v375, %v946
    %v948 = vpop.f32.mrf.mxu0
    %v949 = vpop.f32.mrf.mxu0
    %v950 = vpop.f32.mrf.mxu0
    %951 = vdwg.mxu0
    %v952 = vadd.f32 %v367, %v947
    %v953 = vxor.u32 %v952, 2147483648
    %v954 = vmul.f32 %v953, 1.442695
    %v955 = vpow.pop %v954
    %v956 = vadd.f32 %v955, 1.0
    %v957 = vrcp.pop %v956
    %v958 = vmul.f32 1.0, %v957
    %960 = vrot.lane.b32.xlu0 %v947, 64
    %v961 = vpop.permute.xlu0 %960
    %v963 = vmul.f32 %v958, %v961
    %965 = vrot.lane.b32.xlu0 %v963, 64
    %v966 = vpop.permute.xlu0 %965
    %v968 = vadd.f32 %v367, %v966
    %v969 = vtanh.pop %v968
    %v970 = vsub.f32 %v904, %v969
    %972 = vrot.lane.b32.xlu0 %v970, 96
    %v973 = vpop.permute.xlu0 %972
    %v975 = vmul.f32 %v958, %v973
    %977 = vrot.lane.b32.xlu0 %v975, 32
    %v978 = vpop.permute.xlu0 %977
    %v980 = vadd.f32 %v969, %v978
    %v981 = vpack.c.bf16 %v204, %v191
    %v982 = vpack.c.bf16 %v230, %v217
    %v983 = vpack.c.bf16 %v256, %v243
    %v984 = vpack.c.bf16 %v282, %v269
    %v985 = vpack.c.bf16 %v71, %v70
    %v986 = vlaneseq
    %v987 = vshrl.u32 %v986, 7
    %v988 = vsub.s32 0, %v987
    %v989 = vrot.slane %v82, %v988
    %v991 = vsel %vm292, %v981, 0
    %v994 = vsel %vm292, %v982, 0
    %v997 = vsel %vm292, %v983, 0
    %v1000 = vsel %vm292, %v984, 0
    %1002 = vmatprep.subr.bf16.mxu0 0
    %1003 = vmatpush1.bf16.msra.mxu0 0
    %1004 = vmatprep.subr.bf16.mxu0 0
    %1005 = vmatpush1.bf16.msra.mxu0 0
    %1006 = vmatprep.subr.bf16.mxu0 0
    %1007 = vmatpush1.bf16.msra.mxu0 0
    %1008 = vmatprep.subr.bf16.mxu0 0
    %1009 = vmatpush1.bf16.msra.mxu0 0
    %1010 = vmatprep.subr.bf16.mxu0 0
    %1011 = vmatpush1.bf16.msra.mxu0 0
    %1012 = vmatprep.subr.bf16.mxu0 0
    %1013 = vmatpush1.bf16.msra.mxu0 0
    %1014 = vmatprep.subr.bf16.mxu0 0
    %1015 = vmatpush1.bf16.msra.mxu0 0
    %1016 = vmatprep.subr.bf16.mxu0 0
    %1017 = vmatpush1.bf16.msra.mxu0 %v985
    %1018 = vmatprep.subr.bf16.mxu0 0
    %1019 = vmatpush2.bf16.msra.mxu0 0
    %1020 = vmatprep.subr.bf16.mxu0 0
    %1021 = vmatpush2.bf16.msra.mxu0 0
    %1022 = vmatprep.subr.bf16.mxu0 0
    %1023 = vmatpush2.bf16.msra.mxu0 0
    %1024 = vmatprep.subr.bf16.mxu0 0
    %1025 = vmatpush2.bf16.msra.mxu0 0
    %1026 = vmatprep.subr.bf16.mxu0 0
    %1027 = vmatpush2.bf16.msra.mxu0 0
    %1028 = vmatprep.subr.bf16.mxu0 0
    %1029 = vmatpush2.bf16.msra.mxu0 0
    %1030 = vmatprep.subr.bf16.mxu0 0
    %1031 = vmatpush2.bf16.msra.mxu0 0
    %1032 = vmatprep.subr.bf16.mxu0 0
    %1033 = vmatpush2.bf16.msra.mxu0 0
    %1034 = vmatprep.mubr.bf16.mxu0 0
    %1035 = vmatmul.mubr.bf16.gmra.mxu0 %v991
    %v1036 = vpop.f32.mrf.mxu0
    %v1037 = vadd.f32 %v989, %v1036
    %v1038 = vpop.f32.mrf.mxu0
    %v1039 = vpop.f32.mrf.mxu0
    %v1040 = vadd.f32 %v989, %v1039
    %v1041 = vpop.f32.mrf.mxu0
    %1042 = vmatprep.mubr.bf16.mxu0 0
    %1043 = vmatmul.mubr.bf16.gmra.mxu0 %v994
    %v1044 = vpop.f32.mrf.mxu0
    %v1045 = vadd.f32 %v989, %v1044
    %v1046 = vpop.f32.mrf.mxu0
    %v1047 = vpop.f32.mrf.mxu0
    %v1048 = vadd.f32 %v989, %v1047
    %v1049 = vpop.f32.mrf.mxu0
    %1050 = vmatprep.mubr.bf16.mxu0 0
    %1051 = vmatmul.mubr.bf16.gmra.mxu0 %v997
    %v1052 = vpop.f32.mrf.mxu0
    %v1053 = vadd.f32 %v989, %v1052
    %v1054 = vpop.f32.mrf.mxu0
    %v1055 = vpop.f32.mrf.mxu0
    %v1056 = vadd.f32 %v989, %v1055
    %v1057 = vpop.f32.mrf.mxu0
    %1058 = vmatprep.mubr.bf16.mxu0 0
    %1059 = vmatmul.mubr.bf16.gmra.mxu0 %v1000
    %v1060 = vpop.f32.mrf.mxu0
    %v1061 = vadd.f32 %v989, %v1060
    %v1062 = vpop.f32.mrf.mxu0
    %v1063 = vpop.f32.mrf.mxu0
    %v1064 = vadd.f32 %v989, %v1063
    %v1065 = vpop.f32.mrf.mxu0
    %1066 = vdwg.mxu0
    %v1067 = vpack.c.bf16 %v980, %v980
    %v1068 = vpack.c.bf16 %v73, %v72
    %v1069 = vpack.c.bf16 %v75, %v74
    %1071 = vrot.lane.b32.xlu0 %v1067, 64
    %v1072 = vpop.permute.xlu0 %1071
    %v1074 = vsel %vm376, %v1072, 0
    %1076 = vmatprep.subr.bf16.mxu0 0
    %1077 = vmatpush1.bf16.msra.mxu0 0
    %1078 = vmatprep.subr.bf16.mxu0 0
    %1079 = vmatpush1.bf16.msra.mxu0 0
    %1080 = vmatprep.subr.bf16.mxu0 0
    %1081 = vmatpush1.bf16.msra.mxu0 0
    %1082 = vmatprep.subr.bf16.mxu0 0
    %1083 = vmatpush1.bf16.msra.mxu0 0
    %1084 = vmatprep.subr.bf16.mxu0 0
    %1085 = vmatpush1.bf16.msra.mxu0 0
    %1086 = vmatprep.subr.bf16.mxu0 0
    %1087 = vmatpush1.bf16.msra.mxu0 0
    %1088 = vmatprep.subr.bf16.mxu0 0
    %1089 = vmatpush1.bf16.msra.mxu0 %v1069
    %1090 = vmatprep.subr.bf16.mxu0 0
    %1091 = vmatpush1.bf16.msra.mxu0 %v1068
    %1092 = vmatprep.subr.bf16.mxu0 0
    %1093 = vmatpush2.bf16.msra.mxu0 0
    %1094 = vmatprep.subr.bf16.mxu0 0
    %1095 = vmatpush2.bf16.msra.mxu0 0
    %1096 = vmatprep.subr.bf16.mxu0 0
    %1097 = vmatpush2.bf16.msra.mxu0 0
    %1098 = vmatprep.subr.bf16.mxu0 0
    %1099 = vmatpush2.bf16.msra.mxu0 0
    %1100 = vmatprep.subr.bf16.mxu0 0
    %1101 = vmatpush2.bf16.msra.mxu0 0
    %1102 = vmatprep.subr.bf16.mxu0 0
    %1103 = vmatpush2.bf16.msra.mxu0 0
    %1104 = vmatprep.subr.bf16.mxu0 0
    %1105 = vmatpush2.bf16.msra.mxu0 0
    %1106 = vmatprep.subr.bf16.mxu0 0
    %1107 = vmatpush2.bf16.msra.mxu0 0
    %1108 = vmatprep.mubr.bf16.mxu0 0
    %1109 = vmatmul.mubr.bf16.gmra.mxu0 %v1074
    %v1110 = vpop.f32.mrf.mxu0
    %v1111 = vadd.f32 0.0, %v1110
    %v1112 = vpop.f32.mrf.mxu0
    %v1113 = vpop.f32.mrf.mxu0
    %v1114 = vpop.f32.mrf.mxu0
    %1115 = vdwg.mxu0
    %v1116 = vpack.c.bf16 %v77, %v76
    %v1117 = vpack.c.bf16 %v79, %v78
    %v1118 = vadd.f32 %v1037, %v1111
    %v1119 = vlaneseq
    %v1120 = vshrl.u32 %v1119, 7
    %v1121 = vsub.s32 0, %v1120
    %v1122 = vrot.slane %v83, %v1121
    %1123 = vmatprep.subr.bf16.mxu0 0
    %1124 = vmatpush1.bf16.msra.mxu0 0
    %1125 = vmatprep.subr.bf16.mxu0 0
    %1126 = vmatpush1.bf16.msra.mxu0 0
    %1127 = vmatprep.subr.bf16.mxu0 0
    %1128 = vmatpush1.bf16.msra.mxu0 0
    %1129 = vmatprep.subr.bf16.mxu0 0
    %1130 = vmatpush1.bf16.msra.mxu0 0
    %1131 = vmatprep.subr.bf16.mxu0 0
    %1132 = vmatpush1.bf16.msra.mxu0 0
    %1133 = vmatprep.subr.bf16.mxu0 0
    %1134 = vmatpush1.bf16.msra.mxu0 0
    %1135 = vmatprep.subr.bf16.mxu0 0
    %1136 = vmatpush1.bf16.msra.mxu0 %v1117
    %1137 = vmatprep.subr.bf16.mxu0 0
    %1138 = vmatpush1.bf16.msra.mxu0 %v1116
    %1139 = vmatprep.subr.bf16.mxu0 0
    %1140 = vmatpush2.bf16.msra.mxu0 0
    %1141 = vmatprep.subr.bf16.mxu0 0
    %1142 = vmatpush2.bf16.msra.mxu0 0
    %1143 = vmatprep.subr.bf16.mxu0 0
    %1144 = vmatpush2.bf16.msra.mxu0 0
    %1145 = vmatprep.subr.bf16.mxu0 0
    %1146 = vmatpush2.bf16.msra.mxu0 0
    %1147 = vmatprep.subr.bf16.mxu0 0
    %1148 = vmatpush2.bf16.msra.mxu0 0
    %1149 = vmatprep.subr.bf16.mxu0 0
    %1150 = vmatpush2.bf16.msra.mxu0 0
    %1151 = vmatprep.subr.bf16.mxu0 0
    %1152 = vmatpush2.bf16.msra.mxu0 0
    %1153 = vmatprep.subr.bf16.mxu0 0
    %1154 = vmatpush2.bf16.msra.mxu0 0
    %1155 = vmatprep.mubr.bf16.mxu0 0
    %1156 = vmatmul.mubr.bf16.gmra.mxu0 %v1074
    %v1157 = vpop.f32.mrf.mxu0
    %v1158 = vadd.f32 %v1122, %v1157
    %v1159 = vpop.f32.mrf.mxu0
    %v1160 = vpop.f32.mrf.mxu0
    %v1161 = vpop.f32.mrf.mxu0
    %1162 = vdwg.mxu0
    %v1163 = vadd.f32 %v1118, %v1158
    %v1164 = vxor.u32 %v1163, 2147483648
    %v1165 = vmul.f32 %v1164, 1.442695
    %v1166 = vpow.pop %v1165
    %v1167 = vadd.f32 %v1166, 1.0
    %v1168 = vrcp.pop %v1167
    %v1169 = vmul.f32 1.0, %v1168
    %1171 = vrot.lane.b32.xlu0 %v1158, 64
    %v1172 = vpop.permute.xlu0 %1171
    %v1174 = vmul.f32 %v1169, %v1172
    %1176 = vrot.lane.b32.xlu0 %v1174, 64
    %v1177 = vpop.permute.xlu0 %1176
    %v1179 = vadd.f32 %v1118, %v1177
    %v1180 = vtanh.pop %v1179
    %v1181 = vsub.f32 %v980, %v1180
    %1183 = vrot.lane.b32.xlu0 %v1181, 96
    %v1184 = vpop.permute.xlu0 %1183
    %v1186 = vmul.f32 %v1169, %v1184
    %1188 = vrot.lane.b32.xlu0 %v1186, 32
    %v1189 = vpop.permute.xlu0 %1188
    %v1191 = vadd.f32 %v1180, %v1189
    %v1192 = vadd.f32 %v1040, %v1111
    %v1193 = vpack.c.bf16 %v1191, %v1191
    %1195 = vrot.lane.b32.xlu0 %v1193, 64
    %v1196 = vpop.permute.xlu0 %1195
    %v1198 = vsel %vm376, %v1196, 0
    %1200 = vmatprep.subr.bf16.mxu0 0
    %1201 = vmatpush1.bf16.msra.mxu0 0
    %1202 = vmatprep.subr.bf16.mxu0 0
    %1203 = vmatpush1.bf16.msra.mxu0 0
    %1204 = vmatprep.subr.bf16.mxu0 0
    %1205 = vmatpush1.bf16.msra.mxu0 0
    %1206 = vmatprep.subr.bf16.mxu0 0
    %1207 = vmatpush1.bf16.msra.mxu0 0
    %1208 = vmatprep.subr.bf16.mxu0 0
    %1209 = vmatpush1.bf16.msra.mxu0 0
    %1210 = vmatprep.subr.bf16.mxu0 0
    %1211 = vmatpush1.bf16.msra.mxu0 0
    %1212 = vmatprep.subr.bf16.mxu0 0
    %1213 = vmatpush1.bf16.msra.mxu0 %v1117
    %1214 = vmatprep.subr.bf16.mxu0 0
    %1215 = vmatpush1.bf16.msra.mxu0 %v1116
    %1216 = vmatprep.subr.bf16.mxu0 0
    %1217 = vmatpush2.bf16.msra.mxu0 0
    %1218 = vmatprep.subr.bf16.mxu0 0
    %1219 = vmatpush2.bf16.msra.mxu0 0
    %1220 = vmatprep.subr.bf16.mxu0 0
    %1221 = vmatpush2.bf16.msra.mxu0 0
    %1222 = vmatprep.subr.bf16.mxu0 0
    %1223 = vmatpush2.bf16.msra.mxu0 0
    %1224 = vmatprep.subr.bf16.mxu0 0
    %1225 = vmatpush2.bf16.msra.mxu0 0
    %1226 = vmatprep.subr.bf16.mxu0 0
    %1227 = vmatpush2.bf16.msra.mxu0 0
    %1228 = vmatprep.subr.bf16.mxu0 0
    %1229 = vmatpush2.bf16.msra.mxu0 0
    %1230 = vmatprep.subr.bf16.mxu0 0
    %1231 = vmatpush2.bf16.msra.mxu0 0
    %1232 = vmatprep.mubr.bf16.mxu0 0
    %1233 = vmatmul.mubr.bf16.gmra.mxu0 %v1198
    %v1234 = vpop.f32.mrf.mxu0
    %v1235 = vadd.f32 %v1122, %v1234
    %v1236 = vpop.f32.mrf.mxu0
    %v1237 = vpop.f32.mrf.mxu0
    %v1238 = vpop.f32.mrf.mxu0
    %1239 = vdwg.mxu0
    %v1240 = vadd.f32 %v1192, %v1235
    %v1241 = vxor.u32 %v1240, 2147483648
    %v1242 = vmul.f32 %v1241, 1.442695
    %v1243 = vpow.pop %v1242
    %v1244 = vadd.f32 %v1243, 1.0
    %v1245 = vrcp.pop %v1244
    %v1246 = vmul.f32 1.0, %v1245
    %1248 = vrot.lane.b32.xlu0 %v1235, 64
    %v1249 = vpop.permute.xlu0 %1248
    %v1251 = vmul.f32 %v1246, %v1249
    %1253 = vrot.lane.b32.xlu0 %v1251, 64
    %v1254 = vpop.permute.xlu0 %1253
    %v1256 = vadd.f32 %v1192, %v1254
    %v1257 = vtanh.pop %v1256
    %v1258 = vsub.f32 %v1191, %v1257
    %1260 = vrot.lane.b32.xlu0 %v1258, 96
    %v1261 = vpop.permute.xlu0 %1260
    %v1263 = vmul.f32 %v1246, %v1261
    %1265 = vrot.lane.b32.xlu0 %v1263, 32
    %v1266 = vpop.permute.xlu0 %1265
    %v1268 = vadd.f32 %v1257, %v1266
    %v1269 = vadd.f32 %v1045, %v1111
    %v1270 = vpack.c.bf16 %v1268, %v1268
    %1272 = vrot.lane.b32.xlu0 %v1270, 64
    %v1273 = vpop.permute.xlu0 %1272
    %v1275 = vsel %vm376, %v1273, 0
    %1277 = vmatprep.subr.bf16.mxu0 0
    %1278 = vmatpush1.bf16.msra.mxu0 0
    %1279 = vmatprep.subr.bf16.mxu0 0
    %1280 = vmatpush1.bf16.msra.mxu0 0
    %1281 = vmatprep.subr.bf16.mxu0 0
    %1282 = vmatpush1.bf16.msra.mxu0 0
    %1283 = vmatprep.subr.bf16.mxu0 0
    %1284 = vmatpush1.bf16.msra.mxu0 0
    %1285 = vmatprep.subr.bf16.mxu0 0
    %1286 = vmatpush1.bf16.msra.mxu0 0
    %1287 = vmatprep.subr.bf16.mxu0 0
    %1288 = vmatpush1.bf16.msra.mxu0 0
    %1289 = vmatprep.subr.bf16.mxu0 0
    %1290 = vmatpush1.bf16.msra.mxu0 %v1117
    %1291 = vmatprep.subr.bf16.mxu0 0
    %1292 = vmatpush1.bf16.msra.mxu0 %v1116
    %1293 = vmatprep.subr.bf16.mxu0 0
    %1294 = vmatpush2.bf16.msra.mxu0 0
    %1295 = vmatprep.subr.bf16.mxu0 0
    %1296 = vmatpush2.bf16.msra.mxu0 0
    %1297 = vmatprep.subr.bf16.mxu0 0
    %1298 = vmatpush2.bf16.msra.mxu0 0
    %1299 = vmatprep.subr.bf16.mxu0 0
    %1300 = vmatpush2.bf16.msra.mxu0 0
    %1301 = vmatprep.subr.bf16.mxu0 0
    %1302 = vmatpush2.bf16.msra.mxu0 0
    %1303 = vmatprep.subr.bf16.mxu0 0
    %1304 = vmatpush2.bf16.msra.mxu0 0
    %1305 = vmatprep.subr.bf16.mxu0 0
    %1306 = vmatpush2.bf16.msra.mxu0 0
    %1307 = vmatprep.subr.bf16.mxu0 0
    %1308 = vmatpush2.bf16.msra.mxu0 0
    %1309 = vmatprep.mubr.bf16.mxu0 0
    %1310 = vmatmul.mubr.bf16.gmra.mxu0 %v1275
    %v1311 = vpop.f32.mrf.mxu0
    %v1312 = vadd.f32 %v1122, %v1311
    %v1313 = vpop.f32.mrf.mxu0
    %v1314 = vpop.f32.mrf.mxu0
    %v1315 = vpop.f32.mrf.mxu0
    %1316 = vdwg.mxu0
    %v1317 = vadd.f32 %v1269, %v1312
    %v1318 = vxor.u32 %v1317, 2147483648
    %v1319 = vmul.f32 %v1318, 1.442695
    %v1320 = vpow.pop %v1319
    %v1321 = vadd.f32 %v1320, 1.0
    %v1322 = vrcp.pop %v1321
    %v1323 = vmul.f32 1.0, %v1322
    %1325 = vrot.lane.b32.xlu0 %v1312, 64
    %v1326 = vpop.permute.xlu0 %1325
    %v1328 = vmul.f32 %v1323, %v1326
    %1330 = vrot.lane.b32.xlu0 %v1328, 64
    %v1331 = vpop.permute.xlu0 %1330
    %v1333 = vadd.f32 %v1269, %v1331
    %v1334 = vtanh.pop %v1333
    %v1335 = vsub.f32 %v1268, %v1334
    %1337 = vrot.lane.b32.xlu0 %v1335, 96
    %v1338 = vpop.permute.xlu0 %1337
    %v1340 = vmul.f32 %v1323, %v1338
    %1342 = vrot.lane.b32.xlu0 %v1340, 32
    %v1343 = vpop.permute.xlu0 %1342
    %v1345 = vadd.f32 %v1334, %v1343
    %v1346 = vadd.f32 %v1048, %v1111
    %v1347 = vpack.c.bf16 %v1345, %v1345
    %1349 = vrot.lane.b32.xlu0 %v1347, 64
    %v1350 = vpop.permute.xlu0 %1349
    %v1352 = vsel %vm376, %v1350, 0
    %1354 = vmatprep.subr.bf16.mxu0 0
    %1355 = vmatpush1.bf16.msra.mxu0 0
    %1356 = vmatprep.subr.bf16.mxu0 0
    %1357 = vmatpush1.bf16.msra.mxu0 0
    %1358 = vmatprep.subr.bf16.mxu0 0
    %1359 = vmatpush1.bf16.msra.mxu0 0
    %1360 = vmatprep.subr.bf16.mxu0 0
    %1361 = vmatpush1.bf16.msra.mxu0 0
    %1362 = vmatprep.subr.bf16.mxu0 0
    %1363 = vmatpush1.bf16.msra.mxu0 0
    %1364 = vmatprep.subr.bf16.mxu0 0
    %1365 = vmatpush1.bf16.msra.mxu0 0
    %1366 = vmatprep.subr.bf16.mxu0 0
    %1367 = vmatpush1.bf16.msra.mxu0 %v1117
    %1368 = vmatprep.subr.bf16.mxu0 0
    %1369 = vmatpush1.bf16.msra.mxu0 %v1116
    %1370 = vmatprep.subr.bf16.mxu0 0
    %1371 = vmatpush2.bf16.msra.mxu0 0
    %1372 = vmatprep.subr.bf16.mxu0 0
    %1373 = vmatpush2.bf16.msra.mxu0 0
    %1374 = vmatprep.subr.bf16.mxu0 0
    %1375 = vmatpush2.bf16.msra.mxu0 0
    %1376 = vmatprep.subr.bf16.mxu0 0
    %1377 = vmatpush2.bf16.msra.mxu0 0
    %1378 = vmatprep.subr.bf16.mxu0 0
    %1379 = vmatpush2.bf16.msra.mxu0 0
    %1380 = vmatprep.subr.bf16.mxu0 0
    %1381 = vmatpush2.bf16.msra.mxu0 0
    %1382 = vmatprep.subr.bf16.mxu0 0
    %1383 = vmatpush2.bf16.msra.mxu0 0
    %1384 = vmatprep.subr.bf16.mxu0 0
    %1385 = vmatpush2.bf16.msra.mxu0 0
    %1386 = vmatprep.mubr.bf16.mxu0 0
    %1387 = vmatmul.mubr.bf16.gmra.mxu0 %v1352
    %v1388 = vpop.f32.mrf.mxu0
    %v1389 = vadd.f32 %v1122, %v1388
    %v1390 = vpop.f32.mrf.mxu0
    %v1391 = vpop.f32.mrf.mxu0
    %v1392 = vpop.f32.mrf.mxu0
    %1393 = vdwg.mxu0
    %v1394 = vadd.f32 %v1346, %v1389
    %v1395 = vxor.u32 %v1394, 2147483648
    %v1396 = vmul.f32 %v1395, 1.442695
    %v1397 = vpow.pop %v1396
    %v1398 = vadd.f32 %v1397, 1.0
    %v1399 = vrcp.pop %v1398
    %v1400 = vmul.f32 1.0, %v1399
    %1402 = vrot.lane.b32.xlu0 %v1389, 64
    %v1403 = vpop.permute.xlu0 %1402
    %v1405 = vmul.f32 %v1400, %v1403
    %1407 = vrot.lane.b32.xlu0 %v1405, 64
    %v1408 = vpop.permute.xlu0 %1407
    %v1410 = vadd.f32 %v1346, %v1408
    %v1411 = vtanh.pop %v1410
    %v1412 = vsub.f32 %v1345, %v1411
    %1414 = vrot.lane.b32.xlu0 %v1412, 96
    %v1415 = vpop.permute.xlu0 %1414
    %v1417 = vmul.f32 %v1400, %v1415
    %1419 = vrot.lane.b32.xlu0 %v1417, 32
    %v1420 = vpop.permute.xlu0 %1419
    %v1422 = vadd.f32 %v1411, %v1420
    %v1423 = vadd.f32 %v1053, %v1111
    %v1424 = vpack.c.bf16 %v1422, %v1422
    %1426 = vrot.lane.b32.xlu0 %v1424, 64
    %v1427 = vpop.permute.xlu0 %1426
    %v1429 = vsel %vm376, %v1427, 0
    %1431 = vmatprep.subr.bf16.mxu0 0
    %1432 = vmatpush1.bf16.msra.mxu0 0
    %1433 = vmatprep.subr.bf16.mxu0 0
    %1434 = vmatpush1.bf16.msra.mxu0 0
    %1435 = vmatprep.subr.bf16.mxu0 0
    %1436 = vmatpush1.bf16.msra.mxu0 0
    %1437 = vmatprep.subr.bf16.mxu0 0
    %1438 = vmatpush1.bf16.msra.mxu0 0
    %1439 = vmatprep.subr.bf16.mxu0 0
    %1440 = vmatpush1.bf16.msra.mxu0 0
    %1441 = vmatprep.subr.bf16.mxu0 0
    %1442 = vmatpush1.bf16.msra.mxu0 0
    %1443 = vmatprep.subr.bf16.mxu0 0
    %1444 = vmatpush1.bf16.msra.mxu0 %v1117
    %1445 = vmatprep.subr.bf16.mxu0 0
    %1446 = vmatpush1.bf16.msra.mxu0 %v1116
    %1447 = vmatprep.subr.bf16.mxu0 0
    %1448 = vmatpush2.bf16.msra.mxu0 0
    %1449 = vmatprep.subr.bf16.mxu0 0
    %1450 = vmatpush2.bf16.msra.mxu0 0
    %1451 = vmatprep.subr.bf16.mxu0 0
    %1452 = vmatpush2.bf16.msra.mxu0 0
    %1453 = vmatprep.subr.bf16.mxu0 0
    %1454 = vmatpush2.bf16.msra.mxu0 0
    %1455 = vmatprep.subr.bf16.mxu0 0
    %1456 = vmatpush2.bf16.msra.mxu0 0
    %1457 = vmatprep.subr.bf16.mxu0 0
    %1458 = vmatpush2.bf16.msra.mxu0 0
    %1459 = vmatprep.subr.bf16.mxu0 0
    %1460 = vmatpush2.bf16.msra.mxu0 0
    %1461 = vmatprep.subr.bf16.mxu0 0
    %1462 = vmatpush2.bf16.msra.mxu0 0
    %1463 = vmatprep.mubr.bf16.mxu0 0
    %1464 = vmatmul.mubr.bf16.gmra.mxu0 %v1429
    %v1465 = vpop.f32.mrf.mxu0
    %v1466 = vadd.f32 %v1122, %v1465
    %v1467 = vpop.f32.mrf.mxu0
    %v1468 = vpop.f32.mrf.mxu0
    %v1469 = vpop.f32.mrf.mxu0
    %1470 = vdwg.mxu0
    %v1471 = vadd.f32 %v1423, %v1466
    %v1472 = vxor.u32 %v1471, 2147483648
    %v1473 = vmul.f32 %v1472, 1.442695
    %v1474 = vpow.pop %v1473
    %v1475 = vadd.f32 %v1474, 1.0
    %v1476 = vrcp.pop %v1475
    %v1477 = vmul.f32 1.0, %v1476
    %1479 = vrot.lane.b32.xlu0 %v1466, 64
    %v1480 = vpop.permute.xlu0 %1479
    %v1482 = vmul.f32 %v1477, %v1480
    %1484 = vrot.lane.b32.xlu0 %v1482, 64
    %v1485 = vpop.permute.xlu0 %1484
    %v1487 = vadd.f32 %v1423, %v1485
    %v1488 = vtanh.pop %v1487
    %v1489 = vsub.f32 %v1422, %v1488
    %1491 = vrot.lane.b32.xlu0 %v1489, 96
    %v1492 = vpop.permute.xlu0 %1491
    %v1494 = vmul.f32 %v1477, %v1492
    %1496 = vrot.lane.b32.xlu0 %v1494, 32
    %v1497 = vpop.permute.xlu0 %1496
    %v1499 = vadd.f32 %v1488, %v1497
    %v1500 = vadd.f32 %v1056, %v1111
    %v1501 = vpack.c.bf16 %v1499, %v1499
    %1503 = vrot.lane.b32.xlu0 %v1501, 64
    %v1504 = vpop.permute.xlu0 %1503
    %v1506 = vsel %vm376, %v1504, 0
    %1508 = vmatprep.subr.bf16.mxu0 0
    %1509 = vmatpush1.bf16.msra.mxu0 0
    %1510 = vmatprep.subr.bf16.mxu0 0
    %1511 = vmatpush1.bf16.msra.mxu0 0
    %1512 = vmatprep.subr.bf16.mxu0 0
    %1513 = vmatpush1.bf16.msra.mxu0 0
    %1514 = vmatprep.subr.bf16.mxu0 0
    %1515 = vmatpush1.bf16.msra.mxu0 0
    %1516 = vmatprep.subr.bf16.mxu0 0
    %1517 = vmatpush1.bf16.msra.mxu0 0
    %1518 = vmatprep.subr.bf16.mxu0 0
    %1519 = vmatpush1.bf16.msra.mxu0 0
    %1520 = vmatprep.subr.bf16.mxu0 0
    %1521 = vmatpush1.bf16.msra.mxu0 %v1117
    %1522 = vmatprep.subr.bf16.mxu0 0
    %1523 = vmatpush1.bf16.msra.mxu0 %v1116
    %1524 = vmatprep.subr.bf16.mxu0 0
    %1525 = vmatpush2.bf16.msra.mxu0 0
    %1526 = vmatprep.subr.bf16.mxu0 0
    %1527 = vmatpush2.bf16.msra.mxu0 0
    %1528 = vmatprep.subr.bf16.mxu0 0
    %1529 = vmatpush2.bf16.msra.mxu0 0
    %1530 = vmatprep.subr.bf16.mxu0 0
    %1531 = vmatpush2.bf16.msra.mxu0 0
    %1532 = vmatprep.subr.bf16.mxu0 0
    %1533 = vmatpush2.bf16.msra.mxu0 0
    %1534 = vmatprep.subr.bf16.mxu0 0
    %1535 = vmatpush2.bf16.msra.mxu0 0
    %1536 = vmatprep.subr.bf16.mxu0 0
    %1537 = vmatpush2.bf16.msra.mxu0 0
    %1538 = vmatprep.subr.bf16.mxu0 0
    %1539 = vmatpush2.bf16.msra.mxu0 0
    %1540 = vmatprep.mubr.bf16.mxu0 0
    %1541 = vmatmul.mubr.bf16.gmra.mxu0 %v1506
    %v1542 = vpop.f32.mrf.mxu0
    %v1543 = vadd.f32 %v1122, %v1542
    %v1544 = vpop.f32.mrf.mxu0
    %v1545 = vpop.f32.mrf.mxu0
    %v1546 = vpop.f32.mrf.mxu0
    %1547 = vdwg.mxu0
    %v1548 = vadd.f32 %v1500, %v1543
    %v1549 = vxor.u32 %v1548, 2147483648
    %v1550 = vmul.f32 %v1549, 1.442695
    %v1551 = vpow.pop %v1550
    %v1552 = vadd.f32 %v1551, 1.0
    %v1553 = vrcp.pop %v1552
    %v1554 = vmul.f32 1.0, %v1553
    %1556 = vrot.lane.b32.xlu0 %v1543, 64
    %v1557 = vpop.permute.xlu0 %1556
    %v1559 = vmul.f32 %v1554, %v1557
    %1561 = vrot.lane.b32.xlu0 %v1559, 64
    %v1562 = vpop.permute.xlu0 %1561
    %v1564 = vadd.f32 %v1500, %v1562
    %v1565 = vtanh.pop %v1564
    %v1566 = vsub.f32 %v1499, %v1565
    %1568 = vrot.lane.b32.xlu0 %v1566, 96
    %v1569 = vpop.permute.xlu0 %1568
    %v1571 = vmul.f32 %v1554, %v1569
    %1573 = vrot.lane.b32.xlu0 %v1571, 32
    %v1574 = vpop.permute.xlu0 %1573
    %v1576 = vadd.f32 %v1565, %v1574
    %v1577 = vadd.f32 %v1061, %v1111
    %v1578 = vpack.c.bf16 %v1576, %v1576
    %1580 = vrot.lane.b32.xlu0 %v1578, 64
    %v1581 = vpop.permute.xlu0 %1580
    %v1583 = vsel %vm376, %v1581, 0
    %1585 = vmatprep.subr.bf16.mxu0 0
    %1586 = vmatpush1.bf16.msra.mxu0 0
    %1587 = vmatprep.subr.bf16.mxu0 0
    %1588 = vmatpush1.bf16.msra.mxu0 0
    %1589 = vmatprep.subr.bf16.mxu0 0
    %1590 = vmatpush1.bf16.msra.mxu0 0
    %1591 = vmatprep.subr.bf16.mxu0 0
    %1592 = vmatpush1.bf16.msra.mxu0 0
    %1593 = vmatprep.subr.bf16.mxu0 0
    %1594 = vmatpush1.bf16.msra.mxu0 0
    %1595 = vmatprep.subr.bf16.mxu0 0
    %1596 = vmatpush1.bf16.msra.mxu0 0
    %1597 = vmatprep.subr.bf16.mxu0 0
    %1598 = vmatpush1.bf16.msra.mxu0 %v1117
    %1599 = vmatprep.subr.bf16.mxu0 0
    %1600 = vmatpush1.bf16.msra.mxu0 %v1116
    %1601 = vmatprep.subr.bf16.mxu0 0
    %1602 = vmatpush2.bf16.msra.mxu0 0
    %1603 = vmatprep.subr.bf16.mxu0 0
    %1604 = vmatpush2.bf16.msra.mxu0 0
    %1605 = vmatprep.subr.bf16.mxu0 0
    %1606 = vmatpush2.bf16.msra.mxu0 0
    %1607 = vmatprep.subr.bf16.mxu0 0
    %1608 = vmatpush2.bf16.msra.mxu0 0
    %1609 = vmatprep.subr.bf16.mxu0 0
    %1610 = vmatpush2.bf16.msra.mxu0 0
    %1611 = vmatprep.subr.bf16.mxu0 0
    %1612 = vmatpush2.bf16.msra.mxu0 0
    %1613 = vmatprep.subr.bf16.mxu0 0
    %1614 = vmatpush2.bf16.msra.mxu0 0
    %1615 = vmatprep.subr.bf16.mxu0 0
    %1616 = vmatpush2.bf16.msra.mxu0 0
    %1617 = vmatprep.mubr.bf16.mxu0 0
    %1618 = vmatmul.mubr.bf16.gmra.mxu0 %v1583
    %v1619 = vpop.f32.mrf.mxu0
    %v1620 = vadd.f32 %v1122, %v1619
    %v1621 = vpop.f32.mrf.mxu0
    %v1622 = vpop.f32.mrf.mxu0
    %v1623 = vpop.f32.mrf.mxu0
    %1624 = vdwg.mxu0
    %v1625 = vadd.f32 %v1577, %v1620
    %v1626 = vxor.u32 %v1625, 2147483648
    %v1627 = vmul.f32 %v1626, 1.442695
    %v1628 = vpow.pop %v1627
    %v1629 = vadd.f32 %v1628, 1.0
    %v1630 = vrcp.pop %v1629
    %v1631 = vmul.f32 1.0, %v1630
    %1633 = vrot.lane.b32.xlu0 %v1620, 64
    %v1634 = vpop.permute.xlu0 %1633
    %v1636 = vmul.f32 %v1631, %v1634
    %1638 = vrot.lane.b32.xlu0 %v1636, 64
    %v1639 = vpop.permute.xlu0 %1638
    %v1641 = vadd.f32 %v1577, %v1639
    %v1642 = vtanh.pop %v1641
    %v1643 = vsub.f32 %v1576, %v1642
    %1645 = vrot.lane.b32.xlu0 %v1643, 96
    %v1646 = vpop.permute.xlu0 %1645
    %v1648 = vmul.f32 %v1631, %v1646
    %1650 = vrot.lane.b32.xlu0 %v1648, 32
    %v1651 = vpop.permute.xlu0 %1650
    %v1653 = vadd.f32 %v1642, %v1651
    %v1654 = vadd.f32 %v1064, %v1111
    %v1655 = vpack.c.bf16 %v1653, %v1653
    %1657 = vrot.lane.b32.xlu0 %v1655, 64
    %v1658 = vpop.permute.xlu0 %1657
    %v1660 = vsel %vm376, %v1658, 0
    %1662 = vmatprep.subr.bf16.mxu0 0
    %1663 = vmatpush1.bf16.msra.mxu0 0
    %1664 = vmatprep.subr.bf16.mxu0 0
    %1665 = vmatpush1.bf16.msra.mxu0 0
    %1666 = vmatprep.subr.bf16.mxu0 0
    %1667 = vmatpush1.bf16.msra.mxu0 0
    %1668 = vmatprep.subr.bf16.mxu0 0
    %1669 = vmatpush1.bf16.msra.mxu0 0
    %1670 = vmatprep.subr.bf16.mxu0 0
    %1671 = vmatpush1.bf16.msra.mxu0 0
    %1672 = vmatprep.subr.bf16.mxu0 0
    %1673 = vmatpush1.bf16.msra.mxu0 0
    %1674 = vmatprep.subr.bf16.mxu0 0
    %1675 = vmatpush1.bf16.msra.mxu0 %v1117
    %1676 = vmatprep.subr.bf16.mxu0 0
    %1677 = vmatpush1.bf16.msra.mxu0 %v1116
    %1678 = vmatprep.subr.bf16.mxu0 0
    %1679 = vmatpush2.bf16.msra.mxu0 0
    %1680 = vmatprep.subr.bf16.mxu0 0
    %1681 = vmatpush2.bf16.msra.mxu0 0
    %1682 = vmatprep.subr.bf16.mxu0 0
    %1683 = vmatpush2.bf16.msra.mxu0 0
    %1684 = vmatprep.subr.bf16.mxu0 0
    %1685 = vmatpush2.bf16.msra.mxu0 0
    %1686 = vmatprep.subr.bf16.mxu0 0
    %1687 = vmatpush2.bf16.msra.mxu0 0
    %1688 = vmatprep.subr.bf16.mxu0 0
    %1689 = vmatpush2.bf16.msra.mxu0 0
    %1690 = vmatprep.subr.bf16.mxu0 0
    %1691 = vmatpush2.bf16.msra.mxu0 0
    %1692 = vmatprep.subr.bf16.mxu0 0
    %1693 = vmatpush2.bf16.msra.mxu0 0
    %1694 = vmatprep.mubr.bf16.mxu0 0
    %1695 = vmatmul.mubr.bf16.gmra.mxu0 %v1660
    %v1696 = vpop.f32.mrf.mxu0
    %v1697 = vadd.f32 %v1122, %v1696
    %v1698 = vpop.f32.mrf.mxu0
    %v1699 = vpop.f32.mrf.mxu0
    %v1700 = vpop.f32.mrf.mxu0
    %1701 = vdwg.mxu0
    %v1702 = vadd.f32 %v1654, %v1697
    %v1703 = vxor.u32 %v1702, 2147483648
    %v1704 = vmul.f32 %v1703, 1.442695
    %v1705 = vpow.pop %v1704
    %v1706 = vadd.f32 %v1705, 1.0
    %v1707 = vrcp.pop %v1706
    %v1708 = vmul.f32 1.0, %v1707
    %1710 = vrot.lane.b32.xlu0 %v1697, 64
    %v1711 = vpop.permute.xlu0 %1710
    %v1713 = vmul.f32 %v1708, %v1711
    %1715 = vrot.lane.b32.xlu0 %v1713, 64
    %v1716 = vpop.permute.xlu0 %1715
    %v1718 = vadd.f32 %v1654, %v1716
    %v1719 = vtanh.pop %v1718
    %v1720 = vsub.f32 %v1653, %v1719
    %1722 = vrot.lane.b32.xlu0 %v1720, 96
    %v1723 = vpop.permute.xlu0 %1722
    %v1725 = vmul.f32 %v1708, %v1723
    %1727 = vrot.lane.b32.xlu0 %v1725, 32
    %v1728 = vpop.permute.xlu0 %1727
    %v1730 = vadd.f32 %v1719, %v1728
    %v1731 = vpack.c.bf16 %v1268, %v1191
    %v1732 = vpack.c.bf16 %v1422, %v1345
    %v1733 = vpack.c.bf16 %v1576, %v1499
    %v1734 = vpack.c.bf16 %v1730, %v1653
    %v1735 = vpack.c.bf16 %v85, %v84
    %v1736 = vpack.c.bf16 %v87, %v86
    %v1737 = vlaneseq
    %v1738 = vshrl.u32 %v1737, 7
    %v1739 = vsub.s32 0, %v1738
    %v1740 = vrot.slane %v88, %v1739
    %1745 = vrot.lane.b32.xlu0 %v1731, 64
    %v1746 = vpop.permute.xlu0 %1745
    %1747 = vrot.lane.b32.xlu0 %v1732, 64
    %v1748 = vpop.permute.xlu0 %1747
    %1749 = vrot.lane.b32.xlu0 %v1733, 64
    %v1750 = vpop.permute.xlu0 %1749
    %1751 = vrot.lane.b32.xlu0 %v1734, 64
    %v1752 = vpop.permute.xlu0 %1751
    %v1754 = vsel %vm376, %v1746, 0
    %v1757 = vsel %vm376, %v1748, 0
    %v1760 = vsel %vm376, %v1750, 0
    %v1763 = vsel %vm376, %v1752, 0
    %1765 = vmatprep.subr.bf16.mxu0 0
    %1766 = vmatpush1.bf16.msra.mxu0 0
    %1767 = vmatprep.subr.bf16.mxu0 0
    %1768 = vmatpush1.bf16.msra.mxu0 0
    %1769 = vmatprep.subr.bf16.mxu0 0
    %1770 = vmatpush1.bf16.msra.mxu0 0
    %1771 = vmatprep.subr.bf16.mxu0 0
    %1772 = vmatpush1.bf16.msra.mxu0 0
    %1773 = vmatprep.subr.bf16.mxu0 0
    %1774 = vmatpush1.bf16.msra.mxu0 0
    %1775 = vmatprep.subr.bf16.mxu0 0
    %1776 = vmatpush1.bf16.msra.mxu0 0
    %1777 = vmatprep.subr.bf16.mxu0 0
    %1778 = vmatpush1.bf16.msra.mxu0 %v1736
    %1779 = vmatprep.subr.bf16.mxu0 0
    %1780 = vmatpush1.bf16.msra.mxu0 %v1735
    %1781 = vmatprep.subr.bf16.mxu0 0
    %1782 = vmatpush2.bf16.msra.mxu0 0
    %1783 = vmatprep.subr.bf16.mxu0 0
    %1784 = vmatpush2.bf16.msra.mxu0 0
    %1785 = vmatprep.subr.bf16.mxu0 0
    %1786 = vmatpush2.bf16.msra.mxu0 0
    %1787 = vmatprep.subr.bf16.mxu0 0
    %1788 = vmatpush2.bf16.msra.mxu0 0
    %1789 = vmatprep.subr.bf16.mxu0 0
    %1790 = vmatpush2.bf16.msra.mxu0 0
    %1791 = vmatprep.subr.bf16.mxu0 0
    %1792 = vmatpush2.bf16.msra.mxu0 0
    %1793 = vmatprep.subr.bf16.mxu0 0
    %1794 = vmatpush2.bf16.msra.mxu0 0
    %1795 = vmatprep.subr.bf16.mxu0 0
    %1796 = vmatpush2.bf16.msra.mxu0 0
    %1797 = vmatprep.mubr.bf16.mxu0 0
    %1798 = vmatmul.mubr.bf16.gmra.mxu0 %v1754
    %v1799 = vpop.f32.mrf.mxu0
    %v1800 = vadd.f32 %v1740, %v1799
    %v1801 = vpop.f32.mrf.mxu0
    %v1802 = vpop.f32.mrf.mxu0
    %v1803 = vadd.f32 %v1740, %v1802
    %v1804 = vpop.f32.mrf.mxu0
    %1805 = vmatprep.mubr.bf16.mxu0 0
    %1806 = vmatmul.mubr.bf16.gmra.mxu0 %v1757
    %v1807 = vpop.f32.mrf.mxu0
    %v1808 = vadd.f32 %v1740, %v1807
    %v1809 = vpop.f32.mrf.mxu0
    %v1810 = vpop.f32.mrf.mxu0
    %v1811 = vadd.f32 %v1740, %v1810
    %v1812 = vpop.f32.mrf.mxu0
    %1813 = vmatprep.mubr.bf16.mxu0 0
    %1814 = vmatmul.mubr.bf16.gmra.mxu0 %v1760
    %v1815 = vpop.f32.mrf.mxu0
    %v1816 = vadd.f32 %v1740, %v1815
    %v1817 = vpop.f32.mrf.mxu0
    %v1818 = vpop.f32.mrf.mxu0
    %v1819 = vadd.f32 %v1740, %v1818
    %v1820 = vpop.f32.mrf.mxu0
    %1821 = vmatprep.mubr.bf16.mxu0 0
    %1822 = vmatmul.mubr.bf16.gmra.mxu0 %v1763
    %v1823 = vpop.f32.mrf.mxu0
    %v1824 = vadd.f32 %v1740, %v1823
    %v1825 = vpop.f32.mrf.mxu0
    %v1826 = vpop.f32.mrf.mxu0
    %v1827 = vadd.f32 %v1740, %v1826
    %v1828 = vpop.f32.mrf.mxu0
    %1829 = vdwg.mxu0
    %v1838 = vrot.slane %v1803, 7
    %vm1839 = vcmask 1041409
    %v1840 = vsel %vm1839, %v1838, %v1800
    %v1841 = vrot.slane %v1808, 6
    %vm1842 = vcmask 1042434
    %v1843 = vsel %vm1842, %v1841, %v1840
    %v1844 = vrot.slane %v1811, 5
    %vm1845 = vcmask 1043459
    %v1846 = vsel %vm1845, %v1844, %v1843
    %v1847 = vrot.slane %v1816, 4
    %vm1848 = vcmask 1044484
    %v1849 = vsel %vm1848, %v1847, %v1846
    %v1850 = vrot.slane %v1819, 3
    %vm1851 = vcmask 1045509
    %v1852 = vsel %vm1851, %v1850, %v1849
    %v1853 = vrot.slane %v1824, 2
    %vm1854 = vcmask 1046534
    %v1855 = vsel %vm1854, %v1853, %v1852
    %v1856 = vrot.slane %v1827, 1
    %vm1857 = vcmask 1047559
    %v1858 = vsel %vm1857, %v1856, %v1855
    %vm1860 = vcmask 326656
    %1861 = vst.msk [vmem:[#allocation9] sm:$0xff] %vm1860, %v1858
    %v1862 = vsel %vm1842, %v1838, %v1800
    %v1863 = vsel %vm1845, %v1841, %v1862
    %v1864 = vsel %vm1848, %v1844, %v1863
    %v1865 = vsel %vm1851, %v1847, %v1864
    %v1866 = vsel %vm1854, %v1850, %v1865
    %v1867 = vsel %vm1857, %v1853, %v1866
    %s1870 = scalar_lea.vmem [#allocation9], 8
    %vm1871 = vcmask 326657
    %1872 = vst.msk [vmem:[%s1870 - $0x1] sm:$0xfe] %vm1871, %v1867
    %vm1873 = vcmask 319488
    %1874 = vst.msk [vmem:[%s1870 + $0x7] sm:$0x1] %vm1873, %v1856
    %1876 = vrot.lane.b32.xlu0 %v1730, 64
    %v1877 = vpop.permute.xlu0 %1876
    %vm1879 = vcmask 254976
    %1880 = vst.msk [vmem:[#allocation10] sm:$0x3] %vm1879, %v1877
    // Predicated region
    $region34: #{encoder_decoder_forward.1} parent=1 // pred_check
      _
    $region35: #{encoder_decoder_forward.1} parent=1 // pred_check_branch
      %1882 = sbr.rel (0) target = $region37
    $region36: #{encoder_decoder_forward.1} parent=1 // pred_region
      %s1884 = ssub.s32 256, 256
      %1885 = vsyncadd [#allocation4], %s1884
      %s1886 = sshll.u32 [#allocation9], 4
      %s1887 = int_to_ptr.vmem [resolvable:$true] %s1886
      %1892 = dma.vmem_to_hbm [thread:$0]  %s1887, 256, %s5, [#allocation4], 128, 128, 8
    $region37: #{encoder_decoder_forward.1} parent=1 // pred_fallthru
      _
    // Predicated region
    $region38: #{encoder_decoder_forward.1} parent=1 // pred_check
      _
    $region39: #{encoder_decoder_forward.1} parent=1 // pred_check_branch
      %1894 = sbr.rel (0) target = $region41
    $region40: #{encoder_decoder_forward.1} parent=1 // pred_region
      %s1896 = ssub.s32 32, 32
      %1897 = vsyncadd [#allocation11], %s1896
      %s1899 = sshll.u32 [#allocation10], 4
      %s1900 = int_to_ptr.vmem [resolvable:$true] %s1899
      %1902 = dma.vmem_to_hbm [thread:$0]  %s1900, 32, %s6, [#allocation11]
    $region41: #{encoder_decoder_forward.1} parent=1 // pred_fallthru
      _
    // Predicated region
    $region42: #{encoder_decoder_forward.1} parent=1 // pred_check
      _
    $region43: #{encoder_decoder_forward.1} parent=1 // pred_check_branch
      %1904 = sbr.rel (0) target = $region45
    $region44: #{encoder_decoder_forward.1} parent=1 // pred_region
      %1905 = dma.done [#allocation4], 256
    $region45: #{encoder_decoder_forward.1} parent=1 // pred_fallthru
      _
    // Predicated region
    $region46: #{encoder_decoder_forward.1} parent=1 // pred_check
      _
    $region47: #{encoder_decoder_forward.1} parent=1 // pred_check_branch
      %1907 = sbr.rel (0) target = $region49
    $region48: #{encoder_decoder_forward.1} parent=1 // pred_region
      %1908 = dma.done [#allocation11], 32
    $region49: #{encoder_decoder_forward.1} parent=1 // pred_fallthru
      _
    %1909 = vsyncpa [#allocation3], 1
    %1910 = vsyncpa [#allocation4], 1
    %1911 = vsyncpa [#allocation11], 1
    %1912 = vsyncpa [#allocation5], 1
    %1913 = vsyncpa [#allocation7], 1

</llo_original>
